<compile_context>
chip_gen: v7x
topology: tpu7x:2x2x1
jax: 0.10.0
libtpu: 0.0.40
codegen_flags: <defaults>
</compile_context>

<pallas_src>
import functools

import jax
import jax.numpy as jnp
from jax import lax
from jax.experimental import pallas as pl
from jax.experimental.pallas import tpu as pltpu

NEG_SLOPE = 0.2  # LeakyReLU(0.2)


def _leaky(x):
    return jnp.where(x >= 0, x, NEG_SLOPE * x)


def residual_block_kernel(x_ref, m_ref, w1_ref, b1_ref, w2_ref, b2_ref, w3_ref,
                          o_ref, slab_ref, *, H, W, groups):
    # x_ref : (Cin, HW) f32            m_ref : (9, HW) f32 border masks (0/1)
    # w1_ref: (Cb, Cin) bf16           b1_ref/b2_ref: (Cb, 1) f32
    # w2_ref: (Cb, 9*Cg) bf16   [row g*Cg+co, col (ky*3+kx)*Cg+ci]  group-major im2col
    # w3_ref: (Cin, Cb) bf16           o_ref : (Cin, HW) f32
    # slab_ref: (groups*9*Cg, HW) bf16 scratch -- group-major im2col slab.
    HW = H * W
    Cb = w1_ref.shape[0]
    Cg = Cb // groups
    gk = 9 * Cg

    x = x_ref[...]                                                      # f32 (Cin, HW)

    # ---- conv1 (1x1, bias) + LeakyReLU: bf16 MXU operands, f32 accumulation ----
    h = jnp.dot(w1_ref[...], x.astype(jnp.bfloat16),
                preferred_element_type=jnp.float32)                     # (Cb, HW) f32
    h = _leaky(h + b1_ref[...])

    # ---- conv2 (3x3, padding=1, grouped) as roll+mask im2col, group-major slab ----
    # Lane p of h is (y, x) = (p // W, p % W); tap (dy, dx) needs the value at
    # lane p + dy*W + dx: a circular lane roll (XLU) with host-precomputed
    # border masks zeroing the wrapped lanes.
    t = 0
    for dy in (-1, 0, 1):
        for dx in (-1, 0, 1):
            s = dy * W + dx
            shifted = h if s == 0 else pltpu.roll(h, (-s) % HW, axis=1)
            tap = (shifted * m_ref[t:t + 1, :]).astype(jnp.bfloat16)    # (Cb, HW)
            for g in range(groups):
                # Destination offset g*gk + t*Cg is a multiple of 16 -> aligned
                # bf16 sublane-tile store; source slice is 16-row aligned too.
                slab_ref[g * gk + t * Cg: g * gk + (t + 1) * Cg, :] = (
                    tap[g * Cg:(g + 1) * Cg, :])
            t += 1

    # Per-group contraction (Cg, 9*Cg) @ (9*Cg, HW): no K-passes on the
    # structural zeros of the block-diagonal grouped weight.
    h2_parts = []
    for g in range(groups):
        acc = jnp.dot(w2_ref[g * Cg:(g + 1) * Cg, :],
                      slab_ref[g * gk:(g + 1) * gk, :],
                      preferred_element_type=jnp.float32)               # (Cg, HW) f32
        acc = _leaky(acc + b2_ref[g * Cg:(g + 1) * Cg, :])
        h2_parts.append(acc.astype(jnp.bfloat16))
    h2 = jnp.concatenate(h2_parts, axis=0)                              # (Cb, HW) bf16

    # ---- conv3 (1x1, no bias) + residual (f32) ----
    out = jnp.dot(w3_ref[...], h2, preferred_element_type=jnp.float32)  # (Cin, HW)
    o_ref[...] = (out + x).astype(o_ref.dtype)


def make_tap_masks(H, W):
    """(9, H*W) f32 masks: mask[t, p]=1 iff tap t=(dy,dx) of position p is in-bounds."""
    yy, xx = jnp.meshgrid(jnp.arange(H), jnp.arange(W), indexing="ij")
    yy = yy.reshape(-1)
    xx = xx.reshape(-1)
    rows = []
    for dy in (-1, 0, 1):
        for dx in (-1, 0, 1):
            ok = ((yy + dy >= 0) & (yy + dy < H) &
                  (xx + dx >= 0) & (xx + dx < W))
            rows.append(ok.astype(jnp.float32))
    return jnp.stack(rows, axis=0)


def residual_block(x_nchw, w1, b1, w2, b2, w3, masks, groups):
    """x_nchw: (N, Cin, H, W).  Weights already in kernel layout (see to_kernel_params)."""
    N, Cin, H, W = x_nchw.shape
    Cb = w1.shape[0]
    Cg = Cb // groups
    HW = H * W
    x = x_nchw.reshape(N, Cin, HW)        # free row-major reshape, no transpose

    kernel = functools.partial(residual_block_kernel, H=H, W=W, groups=groups)
    out = pl.pallas_call(
        kernel,
        out_shape=jax.ShapeDtypeStruct((N, Cin, HW), x.dtype),
        grid_spec=pltpu.PrefetchScalarGridSpec(
            num_scalar_prefetch=0,
            grid=(N,),
            in_specs=[
                pl.BlockSpec((None, Cin, HW), lambda b: (b, 0, 0)),   # x (per image)
                pl.BlockSpec((9, HW), lambda b: (0, 0)),              # border masks
                pl.BlockSpec((Cb, Cin), lambda b: (0, 0)),            # w1 (bf16)
                pl.BlockSpec((Cb, 1), lambda b: (0, 0)),              # b1 (f32)
                pl.BlockSpec((Cb, 9 * Cg), lambda b: (0, 0)),         # w2 im2col (bf16)
                pl.BlockSpec((Cb, 1), lambda b: (0, 0)),              # b2 (f32)
                pl.BlockSpec((Cin, Cb), lambda b: (0, 0)),            # w3 (bf16)
            ],
            out_specs=pl.BlockSpec((None, Cin, HW), lambda b: (b, 0, 0)),
            scratch_shapes=[pltpu.VMEM((groups * 9 * Cg, HW), jnp.bfloat16)],
        ),
        compiler_params=pltpu.CompilerParams(dimension_semantics=("parallel",)),
    )(x, masks, w1, b1, w2, b2, w3)

    return out.reshape(N, Cin, H, W)


def make_params(key, in_channels, group_size=16, scale=0.25, zero_conv3=True):
    """Deterministic PyTorch-layout parameters mirroring the module's __init__."""
    Cin = in_channels
    Cb = int(Cin * 1.5)
    groups = max(1, Cb // group_size)
    assert Cb % groups == 0, "grouped-conv construction requires groups | Cb"
    Cg = Cb // groups

    k1, k2, k3, k4, k5 = jax.random.split(key, 5)
    # PyTorch layouts: conv1 (Cb, Cin, 1, 1), conv2 (Cb, Cg, 3, 3), conv3 (Cin, Cb, 1, 1)
    w1_t = jax.random.normal(k1, (Cb, Cin), jnp.float32) * scale
    b1_t = jax.random.normal(k2, (Cb,), jnp.float32) * 0.1
    w2_t = jax.random.normal(k3, (Cb, Cg, 3, 3), jnp.float32) * scale
    b2_t = jax.random.normal(k4, (Cb,), jnp.float32) * 0.1
    if zero_conv3:
        w3_t = jnp.zeros((Cin, Cb), jnp.float32)      # nn.init.zeros_(conv3.weight)
    else:
        w3_t = jax.random.normal(k5, (Cin, Cb), jnp.float32) * scale
    return (w1_t, b1_t, w2_t, b2_t, w3_t, groups)


def to_kernel_params(torch_params, H, W):
    """Kernel-layout (and bf16-cast) parameters.  Data layout in-kernel is (C, H*W)."""
    w1_t, b1_t, w2_t, b2_t, w3_t, groups = torch_params
    Cb = w1_t.shape[0]
    Cg = Cb // groups
    w1 = w1_t.astype(jnp.bfloat16)                          # (Cb, Cin)
    b1 = b1_t.reshape(Cb, 1)                                # f32
    # group-major im2col weight: row g*Cg+co, column (ky*3+kx)*Cg + ci
    w2 = (w2_t.reshape(groups, Cg, Cg, 3, 3)
              .transpose(0, 1, 3, 4, 2)
              .reshape(Cb, 9 * Cg)
              .astype(jnp.bfloat16))
    b2 = b2_t.reshape(Cb, 1)                                # f32
    w3 = w3_t.astype(jnp.bfloat16)                          # (Cin, Cb)
    masks = make_tap_masks(H, W)                            # (9, H*W) f32
    return w1, b1, w2, b2, w3, masks, groups


def ref_forward(x, torch_params, compute_dtype=jnp.float32):
    """Plain-JAX reference mirroring the PyTorch forward (NCHW).
    compute_dtype=bfloat16 emulates the kernel's matmul-operand precision
    (weights + conv inputs in bf16, f32 accumulation / bias / act / residual)."""
    w1_t, b1_t, w2_t, b2_t, w3_t, groups = torch_params
    dn = ("NCHW", "OIHW", "NCHW")

    def conv(inp, w, padding, fgc=1):
        return lax.conv_general_dilated(
            inp.astype(compute_dtype), w.astype(compute_dtype), (1, 1), padding,
            dimension_numbers=dn, feature_group_count=fgc,
            precision=lax.Precision.HIGHEST,
            preferred_element_type=jnp.float32)

    h = conv(x, w1_t[:, :, None, None], "VALID") + b1_t[None, :, None, None]
    h = jnp.where(h >= 0, h, NEG_SLOPE * h)
    h = conv(h, w2_t, ((1, 1), (1, 1)), fgc=groups) + b2_t[None, :, None, None]
    h = jnp.where(h >= 0, h, NEG_SLOPE * h)
    h = conv(h, w3_t[:, :, None, None], "VALID")
    return h + x


if __name__ == "__main__":
    N, Cin, H, W = 2, 32, 16, 16   # bottleneck = 48, groups = 3 (group_size=16)

    key = jax.random.PRNGKey(0)
    kp, kx = jax.random.split(key)
    x = jax.random.normal(kx, (N, Cin, H, W), jnp.float32)

    # Check 1: faithful module init (conv3 weight zero-initialized -> out == x).
    tp = make_params(kp, Cin, zero_conv3=True)
    out = jax.block_until_ready(residual_block(x, *to_kernel_params(tp, H, W)))
    ref = ref_forward(x, tp)
    assert out.shape == (N, Cin, H, W)
    assert jnp.allclose(out, ref, atol=1e-5, rtol=1e-5), "mismatch (zero conv3)"

    # Check 2: random conv3 so the conv1/conv2/conv3 paths are actually exercised
    # (with zero conv3 the output is trivially x).  The reference emulates the
    # kernel's bf16 matmul-operand precision (f32 accumulation, f32 bias/act/
    # residual), so the remaining delta is only reduction-order noise; structural
    # errors (wrong tap/group/weight layout) would be O(1).
    tp2 = make_params(kp, Cin, zero_conv3=False)
    out2 = jax.block_until_ready(residual_block(x, *to_kernel_params(tp2, H, W)))
    ref2 = ref_forward(x, tp2, compute_dtype=jnp.bfloat16)
    max_err = jnp.max(jnp.abs(out2 - ref2))
    assert jnp.allclose(out2, ref2, atol=1e-2, rtol=1e-2), (
        f"mismatch (random conv3), max abs err={max_err}")

    print("KERNEL_OK")
</pallas_src>

<mosaic_0001>
module attributes {stable_mosaic.version = 11 : i64} {
  func.func @residual_block_kernel(%arg0: i32, %arg1: memref<1x32x256xf32, #tpu.memory_space<vmem>>, %arg2: memref<9x256xf32, #tpu.memory_space<vmem>>, %arg3: memref<48x32xbf16, #tpu.memory_space<vmem>>, %arg4: memref<48x1xf32, #tpu.memory_space<vmem>>, %arg5: memref<48x144xbf16, #tpu.memory_space<vmem>>, %arg6: memref<48x1xf32, #tpu.memory_space<vmem>>, %arg7: memref<32x48xbf16, #tpu.memory_space<vmem>>, %arg8: memref<1x32x256xf32, #tpu.memory_space<vmem>>, %arg9: memref<432x256xbf16, #tpu.memory_space<vmem>>) attributes {dimension_semantics = [#tpu.dimension_semantics<parallel>], iteration_bounds = array<i64: 2>, scalar_prefetch = 0 : i64, scratch_operands = 1 : i64, tpu.core_type = #tpu.core_type<tc>, window_params = [{transform_indices = @transform_0, window_bounds = array<i64: 1, 32, 256>}, {pipeline_mode = #tpu.pipeline_mode<synchronous>, transform_indices = @transform_1, window_bounds = array<i64: 9, 256>}, {pipeline_mode = #tpu.pipeline_mode<synchronous>, transform_indices = @transform_2, window_bounds = array<i64: 48, 32>}, {pipeline_mode = #tpu.pipeline_mode<synchronous>, transform_indices = @transform_3, window_bounds = array<i64: 48, 1>}, {pipeline_mode = #tpu.pipeline_mode<synchronous>, transform_indices = @transform_4, window_bounds = array<i64: 48, 144>}, {pipeline_mode = #tpu.pipeline_mode<synchronous>, transform_indices = @transform_5, window_bounds = array<i64: 48, 1>}, {pipeline_mode = #tpu.pipeline_mode<synchronous>, transform_indices = @transform_6, window_bounds = array<i64: 32, 48>}, {transform_indices = @transform_7, window_bounds = array<i64: 1, 32, 256>}]} {
    %c0 = arith.constant 0 : index
    %c0_0 = arith.constant 0 : index
    %c0_1 = arith.constant 0 : index
    %0 = vector.load %arg1[%c0, %c0_0, %c0_1] : memref<1x32x256xf32, #tpu.memory_space<vmem>>, vector<1x32x256xf32>
    %1 = vector.shape_cast %0 : vector<1x32x256xf32> to vector<32x256xf32>
    %c0_2 = arith.constant 0 : index
    %c0_3 = arith.constant 0 : index
    %2 = vector.load %arg3[%c0_2, %c0_3] : memref<48x32xbf16, #tpu.memory_space<vmem>>, vector<48x32xbf16>
    %3 = arith.truncf %1 : vector<32x256xf32> to vector<32x256xbf16>
    %cst = arith.constant dense<0.000000e+00> : vector<48x256xf32>
    %4 = tpu.matmul %2, %3, %cst {dimension_numbers = #tpu.dot_dimension_numbers<[1], [0], [0], [1], [0, 0, 1, 1], [], []>} : vector<48x32xbf16>, vector<32x256xbf16>, vector<48x256xf32> -> vector<48x256xf32>
    %c0_4 = arith.constant 0 : index
    %c0_5 = arith.constant 0 : index
    %5 = vector.load %arg4[%c0_4, %c0_5] : memref<48x1xf32, #tpu.memory_space<vmem>>, vector<48x1xf32>
    %6 = vector.broadcast %5 : vector<48x1xf32> to vector<48x256xf32>
    %7 = arith.addf %4, %6 : vector<48x256xf32>
    %cst_6 = arith.constant 0.000000e+00 : f32
    %8 = vector.broadcast %cst_6 : f32 to vector<48x256xf32>
    %9 = arith.cmpf oge, %7, %8 : vector<48x256xf32>
    %cst_7 = arith.constant 2.000000e-01 : f32
    %10 = vector.broadcast %cst_7 : f32 to vector<48x256xf32>
    %11 = arith.mulf %10, %7 : vector<48x256xf32>
    %12 = arith.select %9, %7, %11 : vector<48x256xi1>, vector<48x256xf32>
    %c17_i32 = arith.constant 17 : i32
    %13 = tpu.dynamic_rotate %12 by %c17_i32 dim 1 : vector<48x256xf32>, i32 -> vector<48x256xf32>
    %c0_8 = arith.constant 0 : index
    %c0_9 = arith.constant 0 : index
    %14 = vector.load %arg2[%c0_8, %c0_9] : memref<9x256xf32, #tpu.memory_space<vmem>>, vector<1x256xf32>
    %15 = vector.broadcast %14 : vector<1x256xf32> to vector<48x256xf32>
    %16 = arith.mulf %13, %15 : vector<48x256xf32>
    %17 = arith.truncf %16 : vector<48x256xf32> to vector<48x256xbf16>
    %18 = vector.extract_strided_slice %17 {offsets = [0, 0], sizes = [16, 256], strides = [1, 1]} : vector<48x256xbf16> to vector<16x256xbf16>
    %c0_10 = arith.constant 0 : index
    %c0_11 = arith.constant 0 : index
    %19 = vector.load %arg9[%c0_10, %c0_11] : memref<432x256xbf16, #tpu.memory_space<vmem>>, vector<16x256xbf16>
    tpu.vector_store %arg9[%c0_10, %c0_11], %18 {strides = array<i32>} : memref<432x256xbf16, #tpu.memory_space<vmem>>, vector<16x256xbf16>,
    %20 = vector.extract_strided_slice %17 {offsets = [16, 0], sizes = [16, 256], strides = [1, 1]} : vector<48x256xbf16> to vector<16x256xbf16>
    %c144 = arith.constant 144 : index
    %c0_12 = arith.constant 0 : index
    %21 = vector.load %arg9[%c144, %c0_12] : memref<432x256xbf16, #tpu.memory_space<vmem>>, vector<16x256xbf16>
    tpu.vector_store %arg9[%c144, %c0_12], %20 {strides = array<i32>} : memref<432x256xbf16, #tpu.memory_space<vmem>>, vector<16x256xbf16>,
    %22 = vector.extract_strided_slice %17 {offsets = [32, 0], sizes = [16, 256], strides = [1, 1]} : vector<48x256xbf16> to vector<16x256xbf16>
    %c288 = arith.constant 288 : index
    %c0_13 = arith.constant 0 : index
    %23 = vector.load %arg9[%c288, %c0_13] : memref<432x256xbf16, #tpu.memory_space<vmem>>, vector<16x256xbf16>
    tpu.vector_store %arg9[%c288, %c0_13], %22 {strides = array<i32>} : memref<432x256xbf16, #tpu.memory_space<vmem>>, vector<16x256xbf16>,
    %c16_i32 = arith.constant 16 : i32
    %24 = tpu.dynamic_rotate %12 by %c16_i32 dim 1 : vector<48x256xf32>, i32 -> vector<48x256xf32>
    %c1 = arith.constant 1 : index
    %c0_14 = arith.constant 0 : index
    %25 = vector.load %arg2[%c1, %c0_14] : memref<9x256xf32, #tpu.memory_space<vmem>>, vector<1x256xf32>
    %26 = vector.broadcast %25 : vector<1x256xf32> to vector<48x256xf32>
    %27 = arith.mulf %24, %26 : vector<48x256xf32>
    %28 = arith.truncf %27 : vector<48x256xf32> to vector<48x256xbf16>
    %29 = vector.extract_strided_slice %28 {offsets = [0, 0], sizes = [16, 256], strides = [1, 1]} : vector<48x256xbf16> to vector<16x256xbf16>
    %c16 = arith.constant 16 : index
    %c0_15 = arith.constant 0 : index
    %30 = vector.load %arg9[%c16, %c0_15] : memref<432x256xbf16, #tpu.memory_space<vmem>>, vector<16x256xbf16>
    tpu.vector_store %arg9[%c16, %c0_15], %29 {strides = array<i32>} : memref<432x256xbf16, #tpu.memory_space<vmem>>, vector<16x256xbf16>,
    %31 = vector.extract_strided_slice %28 {offsets = [16, 0], sizes = [16, 256], strides = [1, 1]} : vector<48x256xbf16> to vector<16x256xbf16>
    %c160 = arith.constant 160 : index
    %c0_16 = arith.constant 0 : index
    %32 = vector.load %arg9[%c160, %c0_16] : memref<432x256xbf16, #tpu.memory_space<vmem>>, vector<16x256xbf16>
    tpu.vector_store %arg9[%c160, %c0_16], %31 {strides = array<i32>} : memref<432x256xbf16, #tpu.memory_space<vmem>>, vector<16x256xbf16>,
    %33 = vector.extract_strided_slice %28 {offsets = [32, 0], sizes = [16, 256], strides = [1, 1]} : vector<48x256xbf16> to vector<16x256xbf16>
    %c304 = arith.constant 304 : index
    %c0_17 = arith.constant 0 : index
    %34 = vector.load %arg9[%c304, %c0_17] : memref<432x256xbf16, #tpu.memory_space<vmem>>, vector<16x256xbf16>
    tpu.vector_store %arg9[%c304, %c0_17], %33 {strides = array<i32>} : memref<432x256xbf16, #tpu.memory_space<vmem>>, vector<16x256xbf16>,
    %c15_i32 = arith.constant 15 : i32
    %35 = tpu.dynamic_rotate %12 by %c15_i32 dim 1 : vector<48x256xf32>, i32 -> vector<48x256xf32>
    %c2 = arith.constant 2 : index
    %c0_18 = arith.constant 0 : index
    %36 = vector.load %arg2[%c2, %c0_18] : memref<9x256xf32, #tpu.memory_space<vmem>>, vector<1x256xf32>
    %37 = vector.broadcast %36 : vector<1x256xf32> to vector<48x256xf32>
    %38 = arith.mulf %35, %37 : vector<48x256xf32>
    %39 = arith.truncf %38 : vector<48x256xf32> to vector<48x256xbf16>
    %40 = vector.extract_strided_slice %39 {offsets = [0, 0], sizes = [16, 256], strides = [1, 1]} : vector<48x256xbf16> to vector<16x256xbf16>
    %c32 = arith.constant 32 : index
    %c0_19 = arith.constant 0 : index
    %41 = vector.load %arg9[%c32, %c0_19] : memref<432x256xbf16, #tpu.memory_space<vmem>>, vector<16x256xbf16>
    tpu.vector_store %arg9[%c32, %c0_19], %40 {strides = array<i32>} : memref<432x256xbf16, #tpu.memory_space<vmem>>, vector<16x256xbf16>,
    %42 = vector.extract_strided_slice %39 {offsets = [16, 0], sizes = [16, 256], strides = [1, 1]} : vector<48x256xbf16> to vector<16x256xbf16>
    %c176 = arith.constant 176 : index
    %c0_20 = arith.constant 0 : index
    %43 = vector.load %arg9[%c176, %c0_20] : memref<432x256xbf16, #tpu.memory_space<vmem>>, vector<16x256xbf16>
    tpu.vector_store %arg9[%c176, %c0_20], %42 {strides = array<i32>} : memref<432x256xbf16, #tpu.memory_space<vmem>>, vector<16x256xbf16>,
    %44 = vector.extract_strided_slice %39 {offsets = [32, 0], sizes = [16, 256], strides = [1, 1]} : vector<48x256xbf16> to vector<16x256xbf16>
    %c320 = arith.constant 320 : index
    %c0_21 = arith.constant 0 : index
    %45 = vector.load %arg9[%c320, %c0_21] : memref<432x256xbf16, #tpu.memory_space<vmem>>, vector<16x256xbf16>
    tpu.vector_store %arg9[%c320, %c0_21], %44 {strides = array<i32>} : memref<432x256xbf16, #tpu.memory_space<vmem>>, vector<16x256xbf16>,
    %c1_i32 = arith.constant 1 : i32
    %46 = tpu.dynamic_rotate %12 by %c1_i32 dim 1 : vector<48x256xf32>, i32 -> vector<48x256xf32>
    %c3 = arith.constant 3 : index
    %c0_22 = arith.constant 0 : index
    %47 = vector.load %arg2[%c3, %c0_22] : memref<9x256xf32, #tpu.memory_space<vmem>>, vector<1x256xf32>
    %48 = vector.broadcast %47 : vector<1x256xf32> to vector<48x256xf32>
    %49 = arith.mulf %46, %48 : vector<48x256xf32>
    %50 = arith.truncf %49 : vector<48x256xf32> to vector<48x256xbf16>
    %51 = vector.extract_strided_slice %50 {offsets = [0, 0], sizes = [16, 256], strides = [1, 1]} : vector<48x256xbf16> to vector<16x256xbf16>
    %c48 = arith.constant 48 : index
    %c0_23 = arith.constant 0 : index
    %52 = vector.load %arg9[%c48, %c0_23] : memref<432x256xbf16, #tpu.memory_space<vmem>>, vector<16x256xbf16>
    tpu.vector_store %arg9[%c48, %c0_23], %51 {strides = array<i32>} : memref<432x256xbf16, #tpu.memory_space<vmem>>, vector<16x256xbf16>,
    %53 = vector.extract_strided_slice %50 {offsets = [16, 0], sizes = [16, 256], strides = [1, 1]} : vector<48x256xbf16> to vector<16x256xbf16>
    %c192 = arith.constant 192 : index
    %c0_24 = arith.constant 0 : index
    %54 = vector.load %arg9[%c192, %c0_24] : memref<432x256xbf16, #tpu.memory_space<vmem>>, vector<16x256xbf16>
    tpu.vector_store %arg9[%c192, %c0_24], %53 {strides = array<i32>} : memref<432x256xbf16, #tpu.memory_space<vmem>>, vector<16x256xbf16>,
    %55 = vector.extract_strided_slice %50 {offsets = [32, 0], sizes = [16, 256], strides = [1, 1]} : vector<48x256xbf16> to vector<16x256xbf16>
    %c336 = arith.constant 336 : index
    %c0_25 = arith.constant 0 : index
    %56 = vector.load %arg9[%c336, %c0_25] : memref<432x256xbf16, #tpu.memory_space<vmem>>, vector<16x256xbf16>
    tpu.vector_store %arg9[%c336, %c0_25], %55 {strides = array<i32>} : memref<432x256xbf16, #tpu.memory_space<vmem>>, vector<16x256xbf16>,
    %c4 = arith.constant 4 : index
    %c0_26 = arith.constant 0 : index
    %57 = vector.load %arg2[%c4, %c0_26] : memref<9x256xf32, #tpu.memory_space<vmem>>, vector<1x256xf32>
    %58 = vector.broadcast %57 : vector<1x256xf32> to vector<48x256xf32>
    %59 = arith.mulf %12, %58 : vector<48x256xf32>
    %60 = arith.truncf %59 : vector<48x256xf32> to vector<48x256xbf16>
    %61 = vector.extract_strided_slice %60 {offsets = [0, 0], sizes = [16, 256], strides = [1, 1]} : vector<48x256xbf16> to vector<16x256xbf16>
    %c64 = arith.constant 64 : index
    %c0_27 = arith.constant 0 : index
    %62 = vector.load %arg9[%c64, %c0_27] : memref<432x256xbf16, #tpu.memory_space<vmem>>, vector<16x256xbf16>
    tpu.vector_store %arg9[%c64, %c0_27], %61 {strides = array<i32>} : memref<432x256xbf16, #tpu.memory_space<vmem>>, vector<16x256xbf16>,
    %63 = vector.extract_strided_slice %60 {offsets = [16, 0], sizes = [16, 256], strides = [1, 1]} : vector<48x256xbf16> to vector<16x256xbf16>
    %c208 = arith.constant 208 : index
    %c0_28 = arith.constant 0 : index
    %64 = vector.load %arg9[%c208, %c0_28] : memref<432x256xbf16, #tpu.memory_space<vmem>>, vector<16x256xbf16>
    tpu.vector_store %arg9[%c208, %c0_28], %63 {strides = array<i32>} : memref<432x256xbf16, #tpu.memory_space<vmem>>, vector<16x256xbf16>,
    %65 = vector.extract_strided_slice %60 {offsets = [32, 0], sizes = [16, 256], strides = [1, 1]} : vector<48x256xbf16> to vector<16x256xbf16>
    %c352 = arith.constant 352 : index
    %c0_29 = arith.constant 0 : index
    %66 = vector.load %arg9[%c352, %c0_29] : memref<432x256xbf16, #tpu.memory_space<vmem>>, vector<16x256xbf16>
    tpu.vector_store %arg9[%c352, %c0_29], %65 {strides = array<i32>} : memref<432x256xbf16, #tpu.memory_space<vmem>>, vector<16x256xbf16>,
    %c255_i32 = arith.constant 255 : i32
    %67 = tpu.dynamic_rotate %12 by %c255_i32 dim 1 : vector<48x256xf32>, i32 -> vector<48x256xf32>
    %c5 = arith.constant 5 : index
    %c0_30 = arith.constant 0 : index
    %68 = vector.load %arg2[%c5, %c0_30] : memref<9x256xf32, #tpu.memory_space<vmem>>, vector<1x256xf32>
    %69 = vector.broadcast %68 : vector<1x256xf32> to vector<48x256xf32>
    %70 = arith.mulf %67, %69 : vector<48x256xf32>
    %71 = arith.truncf %70 : vector<48x256xf32> to vector<48x256xbf16>
    %72 = vector.extract_strided_slice %71 {offsets = [0, 0], sizes = [16, 256], strides = [1, 1]} : vector<48x256xbf16> to vector<16x256xbf16>
    %c80 = arith.constant 80 : index
    %c0_31 = arith.constant 0 : index
    %73 = vector.load %arg9[%c80, %c0_31] : memref<432x256xbf16, #tpu.memory_space<vmem>>, vector<16x256xbf16>
    tpu.vector_store %arg9[%c80, %c0_31], %72 {strides = array<i32>} : memref<432x256xbf16, #tpu.memory_space<vmem>>, vector<16x256xbf16>,
    %74 = vector.extract_strided_slice %71 {offsets = [16, 0], sizes = [16, 256], strides = [1, 1]} : vector<48x256xbf16> to vector<16x256xbf16>
    %c224 = arith.constant 224 : index
    %c0_32 = arith.constant 0 : index
    %75 = vector.load %arg9[%c224, %c0_32] : memref<432x256xbf16, #tpu.memory_space<vmem>>, vector<16x256xbf16>
    tpu.vector_store %arg9[%c224, %c0_32], %74 {strides = array<i32>} : memref<432x256xbf16, #tpu.memory_space<vmem>>, vector<16x256xbf16>,
    %76 = vector.extract_strided_slice %71 {offsets = [32, 0], sizes = [16, 256], strides = [1, 1]} : vector<48x256xbf16> to vector<16x256xbf16>
    %c368 = arith.constant 368 : index
    %c0_33 = arith.constant 0 : index
    %77 = vector.load %arg9[%c368, %c0_33] : memref<432x256xbf16, #tpu.memory_space<vmem>>, vector<16x256xbf16>
    tpu.vector_store %arg9[%c368, %c0_33], %76 {strides = array<i32>} : memref<432x256xbf16, #tpu.memory_space<vmem>>, vector<16x256xbf16>,
    %c241_i32 = arith.constant 241 : i32
    %78 = tpu.dynamic_rotate %12 by %c241_i32 dim 1 : vector<48x256xf32>, i32 -> vector<48x256xf32>
    %c6 = arith.constant 6 : index
    %c0_34 = arith.constant 0 : index
    %79 = vector.load %arg2[%c6, %c0_34] : memref<9x256xf32, #tpu.memory_space<vmem>>, vector<1x256xf32>
    %80 = vector.broadcast %79 : vector<1x256xf32> to vector<48x256xf32>
    %81 = arith.mulf %78, %80 : vector<48x256xf32>
    %82 = arith.truncf %81 : vector<48x256xf32> to vector<48x256xbf16>
    %83 = vector.extract_strided_slice %82 {offsets = [0, 0], sizes = [16, 256], strides = [1, 1]} : vector<48x256xbf16> to vector<16x256xbf16>
    %c96 = arith.constant 96 : index
    %c0_35 = arith.constant 0 : index
    %84 = vector.load %arg9[%c96, %c0_35] : memref<432x256xbf16, #tpu.memory_space<vmem>>, vector<16x256xbf16>
    tpu.vector_store %arg9[%c96, %c0_35], %83 {strides = array<i32>} : memref<432x256xbf16, #tpu.memory_space<vmem>>, vector<16x256xbf16>,
    %85 = vector.extract_strided_slice %82 {offsets = [16, 0], sizes = [16, 256], strides = [1, 1]} : vector<48x256xbf16> to vector<16x256xbf16>
    %c240 = arith.constant 240 : index
    %c0_36 = arith.constant 0 : index
    %86 = vector.load %arg9[%c240, %c0_36] : memref<432x256xbf16, #tpu.memory_space<vmem>>, vector<16x256xbf16>
    tpu.vector_store %arg9[%c240, %c0_36], %85 {strides = array<i32>} : memref<432x256xbf16, #tpu.memory_space<vmem>>, vector<16x256xbf16>,
    %87 = vector.extract_strided_slice %82 {offsets = [32, 0], sizes = [16, 256], strides = [1, 1]} : vector<48x256xbf16> to vector<16x256xbf16>
    %c384 = arith.constant 384 : index
    %c0_37 = arith.constant 0 : index
    %88 = vector.load %arg9[%c384, %c0_37] : memref<432x256xbf16, #tpu.memory_space<vmem>>, vector<16x256xbf16>
    tpu.vector_store %arg9[%c384, %c0_37], %87 {strides = array<i32>} : memref<432x256xbf16, #tpu.memory_space<vmem>>, vector<16x256xbf16>,
    %c240_i32 = arith.constant 240 : i32
    %89 = tpu.dynamic_rotate %12 by %c240_i32 dim 1 : vector<48x256xf32>, i32 -> vector<48x256xf32>
    %c7 = arith.constant 7 : index
    %c0_38 = arith.constant 0 : index
    %90 = vector.load %arg2[%c7, %c0_38] : memref<9x256xf32, #tpu.memory_space<vmem>>, vector<1x256xf32>
    %91 = vector.broadcast %90 : vector<1x256xf32> to vector<48x256xf32>
    %92 = arith.mulf %89, %91 : vector<48x256xf32>
    %93 = arith.truncf %92 : vector<48x256xf32> to vector<48x256xbf16>
    %94 = vector.extract_strided_slice %93 {offsets = [0, 0], sizes = [16, 256], strides = [1, 1]} : vector<48x256xbf16> to vector<16x256xbf16>
    %c112 = arith.constant 112 : index
    %c0_39 = arith.constant 0 : index
    %95 = vector.load %arg9[%c112, %c0_39] : memref<432x256xbf16, #tpu.memory_space<vmem>>, vector<16x256xbf16>
    tpu.vector_store %arg9[%c112, %c0_39], %94 {strides = array<i32>} : memref<432x256xbf16, #tpu.memory_space<vmem>>, vector<16x256xbf16>,
    %96 = vector.extract_strided_slice %93 {offsets = [16, 0], sizes = [16, 256], strides = [1, 1]} : vector<48x256xbf16> to vector<16x256xbf16>
    %c256 = arith.constant 256 : index
    %c0_40 = arith.constant 0 : index
    %97 = vector.load %arg9[%c256, %c0_40] : memref<432x256xbf16, #tpu.memory_space<vmem>>, vector<16x256xbf16>
    tpu.vector_store %arg9[%c256, %c0_40], %96 {strides = array<i32>} : memref<432x256xbf16, #tpu.memory_space<vmem>>, vector<16x256xbf16>,
    %98 = vector.extract_strided_slice %93 {offsets = [32, 0], sizes = [16, 256], strides = [1, 1]} : vector<48x256xbf16> to vector<16x256xbf16>
    %c400 = arith.constant 400 : index
    %c0_41 = arith.constant 0 : index
    %99 = vector.load %arg9[%c400, %c0_41] : memref<432x256xbf16, #tpu.memory_space<vmem>>, vector<16x256xbf16>
    tpu.vector_store %arg9[%c400, %c0_41], %98 {strides = array<i32>} : memref<432x256xbf16, #tpu.memory_space<vmem>>, vector<16x256xbf16>,
    %c239_i32 = arith.constant 239 : i32
    %100 = tpu.dynamic_rotate %12 by %c239_i32 dim 1 : vector<48x256xf32>, i32 -> vector<48x256xf32>
    %c8 = arith.constant 8 : index
    %c0_42 = arith.constant 0 : index
    %101 = vector.load %arg2[%c8, %c0_42] : memref<9x256xf32, #tpu.memory_space<vmem>>, vector<1x256xf32>
    %102 = vector.broadcast %101 : vector<1x256xf32> to vector<48x256xf32>
    %103 = arith.mulf %100, %102 : vector<48x256xf32>
    %104 = arith.truncf %103 : vector<48x256xf32> to vector<48x256xbf16>
    %105 = vector.extract_strided_slice %104 {offsets = [0, 0], sizes = [16, 256], strides = [1, 1]} : vector<48x256xbf16> to vector<16x256xbf16>
    %c128 = arith.constant 128 : index
    %c0_43 = arith.constant 0 : index
    %106 = vector.load %arg9[%c128, %c0_43] : memref<432x256xbf16, #tpu.memory_space<vmem>>, vector<16x256xbf16>
    tpu.vector_store %arg9[%c128, %c0_43], %105 {strides = array<i32>} : memref<432x256xbf16, #tpu.memory_space<vmem>>, vector<16x256xbf16>,
    %107 = vector.extract_strided_slice %104 {offsets = [16, 0], sizes = [16, 256], strides = [1, 1]} : vector<48x256xbf16> to vector<16x256xbf16>
    %c272 = arith.constant 272 : index
    %c0_44 = arith.constant 0 : index
    %108 = vector.load %arg9[%c272, %c0_44] : memref<432x256xbf16, #tpu.memory_space<vmem>>, vector<16x256xbf16>
    tpu.vector_store %arg9[%c272, %c0_44], %107 {strides = array<i32>} : memref<432x256xbf16, #tpu.memory_space<vmem>>, vector<16x256xbf16>,
    %109 = vector.extract_strided_slice %104 {offsets = [32, 0], sizes = [16, 256], strides = [1, 1]} : vector<48x256xbf16> to vector<16x256xbf16>
    %c416 = arith.constant 416 : index
    %c0_45 = arith.constant 0 : index
    %110 = vector.load %arg9[%c416, %c0_45] : memref<432x256xbf16, #tpu.memory_space<vmem>>, vector<16x256xbf16>
    tpu.vector_store %arg9[%c416, %c0_45], %109 {strides = array<i32>} : memref<432x256xbf16, #tpu.memory_space<vmem>>, vector<16x256xbf16>,
    %c0_46 = arith.constant 0 : index
    %c0_47 = arith.constant 0 : index
    %111 = vector.load %arg5[%c0_46, %c0_47] : memref<48x144xbf16, #tpu.memory_space<vmem>>, vector<16x144xbf16>
    %c0_48 = arith.constant 0 : index
    %c0_49 = arith.constant 0 : index
    %112 = vector.load %arg9[%c0_48, %c0_49] : memref<432x256xbf16, #tpu.memory_space<vmem>>, vector<144x256xbf16>
    %cst_50 = arith.constant dense<0.000000e+00> : vector<16x256xf32>
    %113 = tpu.matmul %111, %112, %cst_50 {dimension_numbers = #tpu.dot_dimension_numbers<[1], [0], [0], [1], [0, 0, 1, 1], [], []>} : vector<16x144xbf16>, vector<144x256xbf16>, vector<16x256xf32> -> vector<16x256xf32>
    %c0_51 = arith.constant 0 : index
    %c0_52 = arith.constant 0 : index
    %114 = vector.load %arg6[%c0_51, %c0_52] : memref<48x1xf32, #tpu.memory_space<vmem>>, vector<16x1xf32>
    %115 = vector.broadcast %114 : vector<16x1xf32> to vector<16x256xf32>
    %116 = arith.addf %113, %115 : vector<16x256xf32>
    %cst_53 = arith.constant 0.000000e+00 : f32
    %117 = vector.broadcast %cst_53 : f32 to vector<16x256xf32>
    %118 = arith.cmpf oge, %116, %117 : vector<16x256xf32>
    %cst_54 = arith.constant 2.000000e-01 : f32
    %119 = vector.broadcast %cst_54 : f32 to vector<16x256xf32>
    %120 = arith.mulf %119, %116 : vector<16x256xf32>
    %121 = arith.select %118, %116, %120 : vector<16x256xi1>, vector<16x256xf32>
    %122 = arith.truncf %121 : vector<16x256xf32> to vector<16x256xbf16>
    %c16_55 = arith.constant 16 : index
    %c0_56 = arith.constant 0 : index
    %123 = vector.load %arg5[%c16_55, %c0_56] : memref<48x144xbf16, #tpu.memory_space<vmem>>, vector<16x144xbf16>
    %c144_57 = arith.constant 144 : index
    %c0_58 = arith.constant 0 : index
    %124 = vector.load %arg9[%c144_57, %c0_58] : memref<432x256xbf16, #tpu.memory_space<vmem>>, vector<144x256xbf16>
    %cst_59 = arith.constant dense<0.000000e+00> : vector<16x256xf32>
    %125 = tpu.matmul %123, %124, %cst_59 {dimension_numbers = #tpu.dot_dimension_numbers<[1], [0], [0], [1], [0, 0, 1, 1], [], []>} : vector<16x144xbf16>, vector<144x256xbf16>, vector<16x256xf32> -> vector<16x256xf32>
    %c16_60 = arith.constant 16 : index
    %c0_61 = arith.constant 0 : index
    %126 = vector.load %arg6[%c16_60, %c0_61] : memref<48x1xf32, #tpu.memory_space<vmem>>, vector<16x1xf32>
    %127 = vector.broadcast %126 : vector<16x1xf32> to vector<16x256xf32>
    %128 = arith.addf %125, %127 : vector<16x256xf32>
    %cst_62 = arith.constant 0.000000e+00 : f32
    %129 = vector.broadcast %cst_62 : f32 to vector<16x256xf32>
    %130 = arith.cmpf oge, %128, %129 : vector<16x256xf32>
    %cst_63 = arith.constant 2.000000e-01 : f32
    %131 = vector.broadcast %cst_63 : f32 to vector<16x256xf32>
    %132 = arith.mulf %131, %128 : vector<16x256xf32>
    %133 = arith.select %130, %128, %132 : vector<16x256xi1>, vector<16x256xf32>
    %134 = arith.truncf %133 : vector<16x256xf32> to vector<16x256xbf16>
    %c32_64 = arith.constant 32 : index
    %c0_65 = arith.constant 0 : index
    %135 = vector.load %arg5[%c32_64, %c0_65] : memref<48x144xbf16, #tpu.memory_space<vmem>>, vector<16x144xbf16>
    %c288_66 = arith.constant 288 : index
    %c0_67 = arith.constant 0 : index
    %136 = vector.load %arg9[%c288_66, %c0_67] : memref<432x256xbf16, #tpu.memory_space<vmem>>, vector<144x256xbf16>
    %cst_68 = arith.constant dense<0.000000e+00> : vector<16x256xf32>
    %137 = tpu.matmul %135, %136, %cst_68 {dimension_numbers = #tpu.dot_dimension_numbers<[1], [0], [0], [1], [0, 0, 1, 1], [], []>} : vector<16x144xbf16>, vector<144x256xbf16>, vector<16x256xf32> -> vector<16x256xf32>
    %c32_69 = arith.constant 32 : index
    %c0_70 = arith.constant 0 : index
    %138 = vector.load %arg6[%c32_69, %c0_70] : memref<48x1xf32, #tpu.memory_space<vmem>>, vector<16x1xf32>
    %139 = vector.broadcast %138 : vector<16x1xf32> to vector<16x256xf32>
    %140 = arith.addf %137, %139 : vector<16x256xf32>
    %cst_71 = arith.constant 0.000000e+00 : f32
    %141 = vector.broadcast %cst_71 : f32 to vector<16x256xf32>
    %142 = arith.cmpf oge, %140, %141 : vector<16x256xf32>
    %cst_72 = arith.constant 2.000000e-01 : f32
    %143 = vector.broadcast %cst_72 : f32 to vector<16x256xf32>
    %144 = arith.mulf %143, %140 : vector<16x256xf32>
    %145 = arith.select %142, %140, %144 : vector<16x256xi1>, vector<16x256xf32>
    %146 = arith.truncf %145 : vector<16x256xf32> to vector<16x256xbf16>
    %147 = tpu.concatenate %122, %134, %146 in 0 : vector<16x256xbf16>, vector<16x256xbf16>, vector<16x256xbf16> -> vector<48x256xbf16>
    %c0_73 = arith.constant 0 : index
    %c0_74 = arith.constant 0 : index
    %148 = vector.load %arg7[%c0_73, %c0_74] : memref<32x48xbf16, #tpu.memory_space<vmem>>, vector<32x48xbf16>
    %cst_75 = arith.constant dense<0.000000e+00> : vector<32x256xf32>
    %149 = tpu.matmul %148, %147, %cst_75 {dimension_numbers = #tpu.dot_dimension_numbers<[1], [0], [0], [1], [0, 0, 1, 1], [], []>} : vector<32x48xbf16>, vector<48x256xbf16>, vector<32x256xf32> -> vector<32x256xf32>
    %150 = arith.addf %149, %1 : vector<32x256xf32>
    %c0_76 = arith.constant 0 : index
    %c0_77 = arith.constant 0 : index
    %c0_78 = arith.constant 0 : index
    %151 = vector.load %arg8[%c0_76, %c0_77, %c0_78] : memref<1x32x256xf32, #tpu.memory_space<vmem>>, vector<1x32x256xf32>
    %152 = vector.shape_cast %151 : vector<1x32x256xf32> to vector<32x256xf32>
    %153 = vector.shape_cast %150 : vector<32x256xf32> to vector<1x32x256xf32>
    tpu.vector_store %arg8[%c0_76, %c0_77, %c0_78], %153 {strides = array<i32>} : memref<1x32x256xf32, #tpu.memory_space<vmem>>, vector<1x32x256xf32>,
    return
  }
  func.func @transform_0(%arg0: i32) -> (i32, i32, i32) {
    %c0_i32 = arith.constant 0 : i32
    %c0_i32_0 = arith.constant 0 : i32
    %c0_i32_1 = arith.constant 0 : i32
    return %arg0, %c0_i32, %c0_i32_0 : i32, i32, i32
  }
  func.func @transform_1(%arg0: i32) -> (i32, i32) {
    %c0_i32 = arith.constant 0 : i32
    %c0_i32_0 = arith.constant 0 : i32
    %c0_i32_1 = arith.constant 0 : i32
    return %c0_i32, %c0_i32_0 : i32, i32
  }
  func.func @transform_2(%arg0: i32) -> (i32, i32) {
    %c0_i32 = arith.constant 0 : i32
    %c0_i32_0 = arith.constant 0 : i32
    %c0_i32_1 = arith.constant 0 : i32
    return %c0_i32, %c0_i32_0 : i32, i32
  }
  func.func @transform_3(%arg0: i32) -> (i32, i32) {
    %c0_i32 = arith.constant 0 : i32
    %c0_i32_0 = arith.constant 0 : i32
    %c0_i32_1 = arith.constant 0 : i32
    return %c0_i32, %c0_i32_0 : i32, i32
  }
  func.func @transform_4(%arg0: i32) -> (i32, i32) {
    %c0_i32 = arith.constant 0 : i32
    %c0_i32_0 = arith.constant 0 : i32
    %c0_i32_1 = arith.constant 0 : i32
    return %c0_i32, %c0_i32_0 : i32, i32
  }
  func.func @transform_5(%arg0: i32) -> (i32, i32) {
    %c0_i32 = arith.constant 0 : i32
    %c0_i32_0 = arith.constant 0 : i32
    %c0_i32_1 = arith.constant 0 : i32
    return %c0_i32, %c0_i32_0 : i32, i32
  }
  func.func @transform_6(%arg0: i32) -> (i32, i32) {
    %c0_i32 = arith.constant 0 : i32
    %c0_i32_0 = arith.constant 0 : i32
    %c0_i32_1 = arith.constant 0 : i32
    return %c0_i32, %c0_i32_0 : i32, i32
  }
  func.func @transform_7(%arg0: i32) -> (i32, i32, i32) {
    %c0_i32 = arith.constant 0 : i32
    %c0_i32_0 = arith.constant 0 : i32
    %c0_i32_1 = arith.constant 0 : i32
    return %arg0, %c0_i32, %c0_i32_0 : i32, i32, i32
  }
}

</mosaic_0001>

<llo_original>
// kernel: tpu_custom_call.1
$region0: #{tpu_custom_call.1}
  #allocation0 [shape = 'u32[]', space=smem, size = 0x4, offset = 0x4, fixed_abs, tag = 'smem constant byte address 0x4 - core index']
  #allocation1 [shape = 'u32[144,128]{1,0:T(1,128)}', space=vmem, size = 0x12000, scoped, tag = 'internal scratch']
  #allocation2 [shape = 'bf16[432,256]{1,0:T(16,128)(2,1)}', space=vmem, size = 0x36000, scoped, tag = 'scratch operand']
  %s0 = inlined_call_operand.vmem [shape: f32[2,32,256], index: 0, kind: input, shape index: {}]
  %s1 = inlined_call_operand.hbm [shape: f32[9,256], index: 1, kind: input, shape index: {}]
  %s2 = inlined_call_operand.vmem [shape: bf16[48,32], index: 2, kind: input, shape index: {}]
  %s3 = inlined_call_operand.vmem [shape: f32[48,1], index: 3, kind: input, shape index: {}]
  %s4 = inlined_call_operand.hbm [shape: bf16[48,144], index: 4, kind: input, shape index: {}]
  %s5 = inlined_call_operand.vmem [shape: f32[48,1], index: 5, kind: input, shape index: {}]
  %s6 = inlined_call_operand.vmem [shape: bf16[32,48], index: 6, kind: input, shape index: {}]
  %s7 = inlined_call_operand.hbm [shape: f32[2,32,256], index: 7, kind: output, shape index: {}]
  %s8 = sld [smem:[#allocation0]]
  $region69: #{tpu_custom_call.1} parent=0
    _
  %s10 = ssub.s32 1, %s8
  %s11 = scalar_select 0, %s10, %s8
  $region1: #{tpu_custom_call.1} parent=0
    #allocation3 [shape = 'u8[16384]{0}', space=vmem, size = 0x4000, scoped, tag = 'input window, operand 1, single buffered']
    #allocation4 [shape = 's32[2]{0}', space=sflag, size = 0x8, scoped, tag = 'scoped memory for tpu_custom_call.1']
    #allocation5 [shape = 's32[2]{0}', space=sflag, size = 0x8, scoped, tag = 'scoped memory for tpu_custom_call.1']
    #allocation6 [shape = 'u8[24576]{0}', space=vmem, size = 0x6000, scoped, tag = 'input window, operand 4, single buffered']
    #allocation7 [shape = 's32[1]{0}', space=sflag, size = 0x4, scoped, tag = 'scoped memory for tpu_custom_call.1']
    #allocation8 [shape = 'u8[65536]{0}', space=vmem, size = 0x10000, scoped, tag = 'output window, operand 0']
    %12 = vsyncpa [#allocation4], 0
    %13 = vsyncpa [#allocation7], 0
    %14 = vsyncpa [#allocation5], 0
    %s15 = scalar_lea.sflag [#allocation5], 1
    %16 = vsyncpa %s15, 0
    loop: start=0, step=1, limit=4
    $region2: #{tpu_custom_call.1} parent=1 // loop_pre_header
      _
    $region3: #{tpu_custom_call.1} parent=1 // loop_header
      %s18 = sphi 0, %s22
      %p19 = scmp.ge.s32.totalorder %s18, 4
      %s28 = sphi 0, %s30
      %s31 = sphi 0, %s28
      %s32 = sphi 0, %s31
      %s48 = sphi 0, %s32
      %s52 = sphi 0, %s52
      %s54 = sphi 0, %s52
      %s55 = sphi 0, %s54
      %s69 = sphi 0, %s55
      %s73 = sphi 0, %s73
      %s75 = sphi 0, %s73
      %s76 = sphi 0, %s75
      %s90 = sphi 0, %s76
      %s94 = sphi 0, %s94
      %s96 = sphi 0, %s94
      %s97 = sphi 0, %s96
      %s111 = sphi 0, %s97
      %s115 = sphi 0, %s115
      %s117 = sphi 0, %s115
      %s118 = sphi 0, %s117
      %s132 = sphi 0, %s118
      %s136 = sphi 0, %s136
      %s138 = sphi 0, %s136
      %s139 = sphi 0, %s138
      %s153 = sphi 0, %s139
      %s157 = sphi 0, %s157
      %s159 = sphi 0, %s157
      %s160 = sphi 0, %s159
      %s174 = sphi 0, %s160
      %s180 = sphi 0, %s182
      %s183 = sphi 0, %s180
      %s184 = sphi 0, %s183
      %s200 = sphi 0, %s184
    $region4: #{tpu_custom_call.1} parent=1 // loop_header_branch
      %21 = sbr.rel (%p19) target = $region8
    $region5: #{tpu_custom_call.1} parent=1 // loop_body
      %s23 = ssub.s32 %s18, 1
      %s24 = ssub.s32 %s18, 2
      %s25 = sadd.s32 %s18, 1
      %s26 = ssub.s32 %s18, %s25
      %p27 = scmp.eq.s32.totalorder %s26, 0
      %s29 = sadd.s32 %s28, 1
      %s30 = scalar_select %p27, %s28, %s29
      %p33 = pneg %p27
      %p34 = scmp.eq.s32.totalorder %s18, 1
      %p35 = por %p33, %p34
      %p36 = scmp.ne.s32.totalorder %s28, %s31
      %p37 = scmp.eq.s32.totalorder %s18, 0
      %p38 = por %p36, %p37
      %p39 = scmp.ne.s32.totalorder %s28, %s31
      %p40 = scmp.eq.s32.totalorder %s23, 1
      %p41 = por %p39, %p40
      %p42 = scmp.ne.s32.totalorder %s31, %s32
      %p43 = scmp.eq.s32.totalorder %s23, 0
      %p44 = por %p42, %p43
      %p45 = scmp.ne.s32.totalorder %s31, %s32
      %p46 = scmp.eq.s32.totalorder %s24, 1
      %p47 = por %p45, %p46
      %p49 = scmp.ne.s32.totalorder %s32, %s48
      %p50 = scmp.eq.s32.totalorder %s24, 0
      %p51 = por %p49, %p50
      %s53 = sadd.s32 %s52, 1
      %p56 = scmp.eq.s32.totalorder %s18, 1
      %p57 = scmp.ne.s32.totalorder %s52, %s54
      %p58 = scmp.eq.s32.totalorder %s18, 0
      %p59 = por %p57, %p58
      %p60 = scmp.ne.s32.totalorder %s52, %s54
      %p61 = scmp.eq.s32.totalorder %s23, 1
      %p62 = por %p60, %p61
      %p63 = scmp.ne.s32.totalorder %s54, %s55
      %p64 = scmp.eq.s32.totalorder %s23, 0
      %p65 = por %p63, %p64
      %p66 = scmp.ne.s32.totalorder %s54, %s55
      %p67 = scmp.eq.s32.totalorder %s24, 1
      %p68 = por %p66, %p67
      %p70 = scmp.ne.s32.totalorder %s55, %s69
      %p71 = scmp.eq.s32.totalorder %s24, 0
      %p72 = por %p70, %p71
      %s74 = sadd.s32 %s73, 1
      %p77 = scmp.eq.s32.totalorder %s18, 1
      %p78 = scmp.ne.s32.totalorder %s73, %s75
      %p79 = scmp.eq.s32.totalorder %s18, 0
      %p80 = por %p78, %p79
      %p81 = scmp.ne.s32.totalorder %s73, %s75
      %p82 = scmp.eq.s32.totalorder %s23, 1
      %p83 = por %p81, %p82
      %p84 = scmp.ne.s32.totalorder %s75, %s76
      %p85 = scmp.eq.s32.totalorder %s23, 0
      %p86 = por %p84, %p85
      %p87 = scmp.ne.s32.totalorder %s75, %s76
      %p88 = scmp.eq.s32.totalorder %s24, 1
      %p89 = por %p87, %p88
      %p91 = scmp.ne.s32.totalorder %s76, %s90
      %p92 = scmp.eq.s32.totalorder %s24, 0
      %p93 = por %p91, %p92
      %s95 = sadd.s32 %s94, 1
      %p98 = scmp.eq.s32.totalorder %s18, 1
      %p99 = scmp.ne.s32.totalorder %s94, %s96
      %p100 = scmp.eq.s32.totalorder %s18, 0
      %p101 = por %p99, %p100
      %p102 = scmp.ne.s32.totalorder %s94, %s96
      %p103 = scmp.eq.s32.totalorder %s23, 1
      %p104 = por %p102, %p103
      %p105 = scmp.ne.s32.totalorder %s96, %s97
      %p106 = scmp.eq.s32.totalorder %s23, 0
      %p107 = por %p105, %p106
      %p108 = scmp.ne.s32.totalorder %s96, %s97
      %p109 = scmp.eq.s32.totalorder %s24, 1
      %p110 = por %p108, %p109
      %p112 = scmp.ne.s32.totalorder %s97, %s111
      %p113 = scmp.eq.s32.totalorder %s24, 0
      %p114 = por %p112, %p113
      %s116 = sadd.s32 %s115, 1
      %p119 = scmp.eq.s32.totalorder %s18, 1
      %p120 = scmp.ne.s32.totalorder %s115, %s117
      %p121 = scmp.eq.s32.totalorder %s18, 0
      %p122 = por %p120, %p121
      %p123 = scmp.ne.s32.totalorder %s115, %s117
      %p124 = scmp.eq.s32.totalorder %s23, 1
      %p125 = por %p123, %p124
      %p126 = scmp.ne.s32.totalorder %s117, %s118
      %p127 = scmp.eq.s32.totalorder %s23, 0
      %p128 = por %p126, %p127
      %p129 = scmp.ne.s32.totalorder %s117, %s118
      %p130 = scmp.eq.s32.totalorder %s24, 1
      %p131 = por %p129, %p130
      %p133 = scmp.ne.s32.totalorder %s118, %s132
      %p134 = scmp.eq.s32.totalorder %s24, 0
      %p135 = por %p133, %p134
      %s137 = sadd.s32 %s136, 1
      %p140 = scmp.eq.s32.totalorder %s18, 1
      %p141 = scmp.ne.s32.totalorder %s136, %s138
      %p142 = scmp.eq.s32.totalorder %s18, 0
      %p143 = por %p141, %p142
      %p144 = scmp.ne.s32.totalorder %s136, %s138
      %p145 = scmp.eq.s32.totalorder %s23, 1
      %p146 = por %p144, %p145
      %p147 = scmp.ne.s32.totalorder %s138, %s139
      %p148 = scmp.eq.s32.totalorder %s23, 0
      %p149 = por %p147, %p148
      %p150 = scmp.ne.s32.totalorder %s138, %s139
      %p151 = scmp.eq.s32.totalorder %s24, 1
      %p152 = por %p150, %p151
      %p154 = scmp.ne.s32.totalorder %s139, %s153
      %p155 = scmp.eq.s32.totalorder %s24, 0
      %p156 = por %p154, %p155
      %s158 = sadd.s32 %s157, 1
      %p161 = scmp.eq.s32.totalorder %s18, 1
      %p162 = scmp.ne.s32.totalorder %s157, %s159
      %p163 = scmp.eq.s32.totalorder %s18, 0
      %p164 = por %p162, %p163
      %p165 = scmp.ne.s32.totalorder %s157, %s159
      %p166 = scmp.eq.s32.totalorder %s23, 1
      %p167 = por %p165, %p166
      %p168 = scmp.ne.s32.totalorder %s159, %s160
      %p169 = scmp.eq.s32.totalorder %s23, 0
      %p170 = por %p168, %p169
      %p171 = scmp.ne.s32.totalorder %s159, %s160
      %p172 = scmp.eq.s32.totalorder %s24, 1
      %p173 = por %p171, %p172
      %p175 = scmp.ne.s32.totalorder %s160, %s174
      %p176 = scmp.eq.s32.totalorder %s24, 0
      %p177 = por %p175, %p176
      %s178 = ssub.s32 %s18, %s25
      %p179 = scmp.eq.s32.totalorder %s178, 0
      %s181 = sadd.s32 %s180, 1
      %s182 = scalar_select %p179, %s180, %s181
      %p185 = pneg %p179
      %p186 = scmp.eq.s32.totalorder %s18, 1
      %p187 = por %p185, %p186
      %p188 = scmp.ne.s32.totalorder %s180, %s183
      %p189 = scmp.eq.s32.totalorder %s18, 0
      %p190 = por %p188, %p189
      %p191 = scmp.ne.s32.totalorder %s180, %s183
      %p192 = scmp.eq.s32.totalorder %s23, 1
      %p193 = por %p191, %p192
      %p194 = scmp.ne.s32.totalorder %s183, %s184
      %p195 = scmp.eq.s32.totalorder %s23, 0
      %p196 = por %p194, %p195
      %p197 = scmp.ne.s32.totalorder %s183, %s184
      %p198 = scmp.eq.s32.totalorder %s24, 1
      %p199 = por %p197, %p198
      %p201 = scmp.ne.s32.totalorder %s184, %s200
      %p202 = scmp.eq.s32.totalorder %s24, 0
      %p203 = por %p201, %p202
      %p204 = scmp.le.s32.totalorder 1, %s18
      %p205 = scmp.lt.s32.totalorder %s18, 3
      %p206 = pnand %p204, %p205
      %p207 = pneg %p206
      // Predicated region
      $region9: #{tpu_custom_call.1} parent=5 // pred_check
        _
      $region10: #{tpu_custom_call.1} parent=5 // pred_check_branch
        %209 = sbr.rel (%p206) target = $region12
      $region11: #{tpu_custom_call.1} parent=5 // pred_region
        %s210 = ssub.s32 %s18, 1
        // Predicated region
        $region13: #{tpu_custom_call.1} parent=11 // pred_check
          %p211 = pneg %p65
        $region14: #{tpu_custom_call.1} parent=11 // pred_check_branch
          %213 = sbr.rel (%p211) target = $region16
        $region15: #{tpu_custom_call.1} parent=11 // pred_region
          %s215 = ssub.s32 512, 512
          %216 = vsyncadd [#allocation4], %s215
          %s217 = sshll.u32 [#allocation3], 4
          %s218 = int_to_ptr.vmem [resolvable:$true] %s217
          %223 = dma.hbm_to_vmem [thread:$0]  %s1, 512, %s218, [#allocation4], 256, 256, 16
        $region16: #{tpu_custom_call.1} parent=11 // pred_fallthru
          _
        // Predicated region
        $region17: #{tpu_custom_call.1} parent=11 // pred_check
          %p224 = pneg %p86
        $region18: #{tpu_custom_call.1} parent=11 // pred_check_branch
          %226 = sbr.rel (%p224) target = $region20
        $region19: #{tpu_custom_call.1} parent=11 // pred_region
          _
        $region20: #{tpu_custom_call.1} parent=11 // pred_fallthru
          _
        // Predicated region
        $region21: #{tpu_custom_call.1} parent=11 // pred_check
          %p227 = pneg %p107
        $region22: #{tpu_custom_call.1} parent=11 // pred_check_branch
          %229 = sbr.rel (%p227) target = $region24
        $region23: #{tpu_custom_call.1} parent=11 // pred_region
          _
        $region24: #{tpu_custom_call.1} parent=11 // pred_fallthru
          _
        // Predicated region
        $region25: #{tpu_custom_call.1} parent=11 // pred_check
          %p230 = pneg %p128
        $region26: #{tpu_custom_call.1} parent=11 // pred_check_branch
          %232 = sbr.rel (%p230) target = $region28
        $region27: #{tpu_custom_call.1} parent=11 // pred_region
          %s234 = ssub.s32 768, 768
          %235 = vsyncadd [#allocation7], %s234
          %s236 = sshll.u32 [#allocation6], 4
          %s237 = int_to_ptr.vmem [resolvable:$true] %s236
          %242 = dma.hbm_to_vmem [thread:$0]  %s4, 768, %s237, [#allocation7], 128, 128, 8
        $region28: #{tpu_custom_call.1} parent=11 // pred_fallthru
          _
        // Predicated region
        $region29: #{tpu_custom_call.1} parent=11 // pred_check
          %p243 = pneg %p149
        $region30: #{tpu_custom_call.1} parent=11 // pred_check_branch
          %245 = sbr.rel (%p243) target = $region32
        $region31: #{tpu_custom_call.1} parent=11 // pred_region
          _
        $region32: #{tpu_custom_call.1} parent=11 // pred_fallthru
          _
        // Predicated region
        $region33: #{tpu_custom_call.1} parent=11 // pred_check
          %p246 = pneg %p170
        $region34: #{tpu_custom_call.1} parent=11 // pred_check_branch
          %248 = sbr.rel (%p246) target = $region36
        $region35: #{tpu_custom_call.1} parent=11 // pred_region
          _
        $region36: #{tpu_custom_call.1} parent=11 // pred_fallthru
          _
      $region12: #{tpu_custom_call.1} parent=5 // pred_fallthru
        _
      %p249 = scmp.lt.s32.totalorder %s18, 2
      // Predicated region
      $region37: #{tpu_custom_call.1} parent=5 // pred_check
        %p250 = pneg %p249
      $region38: #{tpu_custom_call.1} parent=5 // pred_check_branch
        %252 = sbr.rel (%p250) target = $region40
      $region39: #{tpu_custom_call.1} parent=5 // pred_region
        // Predicated region
        $region41: #{tpu_custom_call.1} parent=39 // pred_check
          %p253 = pneg %p38
        $region42: #{tpu_custom_call.1} parent=39 // pred_check_branch
          %255 = sbr.rel (%p253) target = $region44
        $region43: #{tpu_custom_call.1} parent=39 // pred_region
          %p256 = scmp.lt.s32.totalorder %s18, 1
          %s257 = scalar_select %p256, %s18, 1
          %s258 = smul.addr %s257, 8
          %s259 = smul.addr %s258, 8
          %s260 = scalar_lea.vmem %s0, %s259
        $region44: #{tpu_custom_call.1} parent=39 // pred_fallthru
          _
      $region40: #{tpu_custom_call.1} parent=5 // pred_fallthru
        _
      %p261 = scmp.le.s32.totalorder 1, %s18
      %p262 = scmp.lt.s32.totalorder %s18, 3
      %p263 = pnand %p261, %p262
      %p264 = pneg %p263
      // Predicated region
      $region45: #{tpu_custom_call.1} parent=5 // pred_check
        _
      $region46: #{tpu_custom_call.1} parent=5 // pred_check_branch
        %266 = sbr.rel (%p263) target = $region48
      $region47: #{tpu_custom_call.1} parent=5 // pred_region
        %s267 = ssub.s32 %s18, 1
        // Predicated region
        $region49: #{tpu_custom_call.1} parent=47 // pred_check
          %p268 = pneg %p65
        $region50: #{tpu_custom_call.1} parent=47 // pred_check_branch
          %270 = sbr.rel (%p268) target = $region52
        $region51: #{tpu_custom_call.1} parent=47 // pred_region
          %271 = dma.done [#allocation4], 512
        $region52: #{tpu_custom_call.1} parent=47 // pred_fallthru
          _
        // Predicated region
        $region53: #{tpu_custom_call.1} parent=47 // pred_check
          %p272 = pneg %p128
        $region54: #{tpu_custom_call.1} parent=47 // pred_check_branch
          %274 = sbr.rel (%p272) target = $region56
        $region55: #{tpu_custom_call.1} parent=47 // pred_region
          %275 = dma.done [#allocation7], 768
        $region56: #{tpu_custom_call.1} parent=47 // pred_fallthru
          _
        %p276 = scmp.lt.s32.totalorder %s23, 1
        %s277 = scalar_select %p276, %s23, 1
        %s278 = smul.addr %s277, 8
        %s279 = smul.addr %s278, 8
        %s280 = scalar_lea.vmem %s0, %s279
        %p281 = pneg %p44
        %p282 = pneg %p41
        %p283 = pneg %p65
        %p284 = pneg %p62
        %p285 = pneg %p86
        %p286 = pneg %p83
        %p287 = pneg %p107
        %p288 = pneg %p104
        %p289 = pneg %p128
        %p290 = pneg %p125
        %p291 = pneg %p149
        %p292 = pneg %p146
        %p293 = pneg %p170
        %p294 = pneg %p167
        %p295 = pneg %p196
        %p296 = pneg %p193
        %s297 = sand.u32 %s183, 1
        %s298 = scalar_lea.sflag [#allocation5], %s297
        %s299 = sand.u32 %s183, 1
        %s300 = smul.addr %s299, 64
        %s301 = scalar_lea.vmem [#allocation8], %s300
        %p302 = scmp.lt.s32.totalorder %s23, 1
        %s303 = scalar_select %p302, %s23, 1
        %s304 = smul.addr %s303, 8
        %s305 = smul.addr %s304, 8
        %s306 = scalar_lea.vmem %s0, %s305
        %v308 = vld [vmem:[%s306] sm:$0xff]
        %v309 = vld [vmem:[%s306 + $0x8] sm:$0xff]
        %v310 = vld [vmem:[%s306 + $0x10] sm:$0xff]
        %v311 = vld [vmem:[%s306 + $0x18] sm:$0xff]
        %v312 = vld [vmem:[%s306 + $0x20] sm:$0xff]
        %v313 = vld [vmem:[%s306 + $0x28] sm:$0xff]
        %v314 = vld [vmem:[%s306 + $0x30] sm:$0xff]
        %v315 = vld [vmem:[%s306 + $0x38] sm:$0xff]
        %v316 = vld [vmem:[%s2] sm:$0xf]
        %v317 = vld [vmem:[%s2 + $0x4] sm:$0xf]
        %v318 = vld [vmem:[%s2 + $0x8] sm:$0xf]
        %v319 = vld [vmem:[%s2 + $0xc] sm:$0xf]
        %v320 = vld [vmem:[%s2 + $0x10] sm:$0xf]
        %v321 = vld [vmem:[%s2 + $0x14] sm:$0xf]
        %v322 = vpack.c.bf16 %v310, %v308
        %v323 = vpack.c.bf16 %v311, %v309
        %v324 = vpack.c.bf16 %v314, %v312
        %v325 = vpack.c.bf16 %v315, %v313
        %v326 = vld [vmem:[%s3] sm:$0xff]
        %v327 = vld [vmem:[%s3 + $0x8] sm:$0xff]
        %v328 = vld [vmem:[%s3 + $0x10] sm:$0xff]
        %v329 = vld [vmem:[%s3 + $0x18] sm:$0xff]
        %v330 = vld [vmem:[%s3 + $0x20] sm:$0xff]
        %v331 = vld [vmem:[%s3 + $0x28] sm:$0xff]
        %333 = vset.pattern.permute.xlu0 0
        %334 = vperm.xlu0 %333, %v326
        %v335 = vpop.permute.xlu0 %334
        %338 = vset.pattern.permute.xlu0 0
        %339 = vperm.xlu0 %338, %v327
        %v340 = vpop.permute.xlu0 %339
        %343 = vset.pattern.permute.xlu0 0
        %344 = vperm.xlu0 %343, %v328
        %v345 = vpop.permute.xlu0 %344
        %348 = vset.pattern.permute.xlu0 0
        %349 = vperm.xlu0 %348, %v329
        %v350 = vpop.permute.xlu0 %349
        %353 = vset.pattern.permute.xlu0 0
        %354 = vperm.xlu0 %353, %v330
        %v355 = vpop.permute.xlu0 %354
        %358 = vset.pattern.permute.xlu0 0
        %359 = vperm.xlu0 %358, %v331
        %v360 = vpop.permute.xlu0 %359
        %v368 = vunpack.c.l.b16 %v316
        %v369 = vunpack.c.l.b16 %v317
        %v370 = vunpack.c.l.b16 %v318
        %v371 = vunpack.c.l.b16 %v319
        %v372 = vunpack.c.l.b16 %v320
        %v373 = vunpack.c.l.b16 %v321
        %v374 = vpack.c.b16 %v369, %v368
        %v375 = vpack.c.b16 %v371, %v370
        %v376 = vpack.c.b16 %v373, %v372
        %vm377 = vcmask 261120
        %v379 = vsel %vm377, %v374, 0
        %v382 = vsel %vm377, %v375, 0
        %v385 = vsel %vm377, %v376, 0
        %387 = vmatprep.subr.bf16.mxu0 %v323
        %388 = vmatpush1.bf16.msra.mxu0 %v322
        %389 = vmatprep.subr.bf16.mxu0 %v325
        %390 = vmatpush1.bf16.msra.mxu0 %v324
        %391 = vmatprep.subr.bf16.mxu0 0
        %392 = vmatpush1.bf16.msra.mxu0 0
        %393 = vmatprep.subr.bf16.mxu0 0
        %394 = vmatpush1.bf16.msra.mxu0 0
        %395 = vmatprep.subr.bf16.mxu0 0
        %396 = vmatpush1.bf16.msra.mxu0 0
        %397 = vmatprep.subr.bf16.mxu0 0
        %398 = vmatpush1.bf16.msra.mxu0 0
        %399 = vmatprep.subr.bf16.mxu0 0
        %400 = vmatpush1.bf16.msra.mxu0 0
        %401 = vmatprep.subr.bf16.mxu0 0
        %402 = vmatpush1.bf16.msra.mxu0 0
        %403 = vmatprep.subr.bf16.mxu0 0
        %404 = vmatpush1.bf16.msra.mxu0 0
        %405 = vmatprep.subr.bf16.mxu0 0
        %406 = vmatpush1.bf16.msra.mxu0 0
        %407 = vmatprep.subr.bf16.mxu0 0
        %408 = vmatpush1.bf16.msra.mxu0 0
        %409 = vmatprep.subr.bf16.mxu0 0
        %410 = vmatpush1.bf16.msra.mxu0 0
        %411 = vmatprep.subr.bf16.mxu0 0
        %412 = vmatpush1.bf16.msra.mxu0 0
        %413 = vmatprep.subr.bf16.mxu0 0
        %414 = vmatpush1.bf16.msra.mxu0 0
        %415 = vmatprep.subr.bf16.mxu0 0
        %416 = vmatpush1.bf16.msra.mxu0 0
        %417 = vmatprep.subr.bf16.mxu0 0
        %418 = vmatpush1.bf16.msra.mxu0 0
        %419 = vmatprep.mubr.bf16.mxu0 0
        %420 = vmatmul.mubr.bf16.gmra.mrb[0].mxu0 %v379
        %v421 = vpop.f32.mrb[0].mxu0
        %v422 = vadd.f32 %v335, %v421
        %v423 = vpop.f32.mrb[0].mxu0
        %v424 = vadd.f32 %v335, %v423
        %v425 = vpop.f32.mrb[0].mxu0
        %v426 = vadd.f32 %v340, %v425
        %v427 = vpop.f32.mrb[0].mxu0
        %v428 = vadd.f32 %v340, %v427
        %429 = vmatprep.mubr.bf16.mxu0 0
        %430 = vmatmul.mubr.bf16.gmra.mrb[0].mxu0 %v382
        %v431 = vpop.f32.mrb[0].mxu0
        %v432 = vadd.f32 %v345, %v431
        %v433 = vpop.f32.mrb[0].mxu0
        %v434 = vadd.f32 %v345, %v433
        %v435 = vpop.f32.mrb[0].mxu0
        %v436 = vadd.f32 %v350, %v435
        %v437 = vpop.f32.mrb[0].mxu0
        %v438 = vadd.f32 %v350, %v437
        %439 = vmatprep.mubr.bf16.mxu0 0
        %440 = vmatmul.mubr.bf16.gmra.mrb[0].mxu0 %v385
        %v441 = vpop.f32.mrb[0].mxu0
        %v442 = vadd.f32 %v355, %v441
        %v443 = vpop.f32.mrb[0].mxu0
        %v444 = vadd.f32 %v355, %v443
        %v445 = vpop.f32.mrb[0].mxu0
        %v446 = vadd.f32 %v360, %v445
        %v447 = vpop.f32.mrb[0].mxu0
        %v448 = vadd.f32 %v360, %v447
        %449 = vdwg.mxu0
        %vm450 = vcmp.ge.f32.partialorder %v422, 0.0
        %vm451 = vcmp.ge.f32.partialorder %v424, 0.0
        %vm452 = vcmp.ge.f32.partialorder %v426, 0.0
        %vm453 = vcmp.ge.f32.partialorder %v428, 0.0
        %vm454 = vcmp.ge.f32.partialorder %v432, 0.0
        %vm455 = vcmp.ge.f32.partialorder %v434, 0.0
        %vm456 = vcmp.ge.f32.partialorder %v436, 0.0
        %vm457 = vcmp.ge.f32.partialorder %v438, 0.0
        %vm458 = vcmp.ge.f32.partialorder %v442, 0.0
        %vm459 = vcmp.ge.f32.partialorder %v444, 0.0
        %vm460 = vcmp.ge.f32.partialorder %v446, 0.0
        %vm461 = vcmp.ge.f32.partialorder %v448, 0.0
        %v462 = vmul.f32 %v422, 0.2
        %v463 = vmul.f32 %v424, 0.2
        %v464 = vmul.f32 %v426, 0.2
        %v465 = vmul.f32 %v428, 0.2
        %v466 = vmul.f32 %v432, 0.2
        %v467 = vmul.f32 %v434, 0.2
        %v468 = vmul.f32 %v436, 0.2
        %v469 = vmul.f32 %v438, 0.2
        %v470 = vmul.f32 %v442, 0.2
        %v471 = vmul.f32 %v444, 0.2
        %v472 = vmul.f32 %v446, 0.2
        %v473 = vmul.f32 %v448, 0.2
        %v474 = vsel %vm450, %v422, %v462
        %v475 = vsel %vm451, %v424, %v463
        %v476 = vsel %vm452, %v426, %v464
        %v477 = vsel %vm453, %v428, %v465
        %v478 = vsel %vm454, %v432, %v466
        %v479 = vsel %vm455, %v434, %v467
        %v480 = vsel %vm456, %v436, %v468
        %v481 = vsel %vm457, %v438, %v469
        %v482 = vsel %vm458, %v442, %v470
        %v483 = vsel %vm459, %v444, %v471
        %v484 = vsel %vm460, %v446, %v472
        %v485 = vsel %vm461, %v448, %v473
        %486 = vrot.lane.b32.xlu0 %v474, 17
        %v487 = vpop.permute.xlu0 %486
        %488 = vrot.lane.b32.xlu0 %v476, 17
        %v489 = vpop.permute.xlu0 %488
        %490 = vrot.lane.b32.xlu0 %v478, 17
        %v491 = vpop.permute.xlu0 %490
        %492 = vrot.lane.b32.xlu0 %v480, 17
        %v493 = vpop.permute.xlu0 %492
        %494 = vrot.lane.b32.xlu0 %v482, 17
        %v495 = vpop.permute.xlu0 %494
        %496 = vrot.lane.b32.xlu0 %v484, 17
        %v497 = vpop.permute.xlu0 %496
        %498 = vrot.lane.b32.xlu0 %v475, 17
        %v499 = vpop.permute.xlu0 %498
        %500 = vrot.lane.b32.xlu0 %v477, 17
        %v501 = vpop.permute.xlu0 %500
        %502 = vrot.lane.b32.xlu0 %v479, 17
        %v503 = vpop.permute.xlu0 %502
        %504 = vrot.lane.b32.xlu0 %v481, 17
        %v505 = vpop.permute.xlu0 %504
        %506 = vrot.lane.b32.xlu0 %v483, 17
        %v507 = vpop.permute.xlu0 %506
        %508 = vrot.lane.b32.xlu0 %v485, 17
        %v509 = vpop.permute.xlu0 %508
        %v510 = vlaneseq
        %v511 = vand.u32 %v510, 127
        %vm512 = vcmp.lt.s32.totalorder %v511, 17
        %v513 = vsel %vm512, %v487, %v499
        %v514 = vsel %vm512, %v489, %v501
        %v515 = vsel %vm512, %v491, %v503
        %v516 = vsel %vm512, %v493, %v505
        %v517 = vsel %vm512, %v495, %v507
        %v518 = vsel %vm512, %v497, %v509
        %v519 = vsel %vm512, %v499, %v487
        %v520 = vsel %vm512, %v501, %v489
        %v521 = vsel %vm512, %v503, %v491
        %v522 = vsel %vm512, %v505, %v493
        %v523 = vsel %vm512, %v507, %v495
        %v524 = vsel %vm512, %v509, %v497
        %v525 = vld [vmem:[#allocation3] ss:$8 sm:$0x3]
        %v527 = vlaneseq
        %v528 = vshrl.u32 %v527, 7
        %v529 = vsub.s32 0, %v528
        %v530 = vrot.slane %v525, %v529
        %v531 = vlaneseq
        %v532 = vshrl.u32 %v531, 7
        %v533 = vsub.s32 1, %v532
        %v534 = vrot.slane %v525, %v533
        %v537 = vmul.f32 %v519, %v530
        %v538 = vmul.f32 %v513, %v534
        %v539 = vmul.f32 %v520, %v530
        %v540 = vmul.f32 %v514, %v534
        %v541 = vmul.f32 %v521, %v530
        %v542 = vmul.f32 %v515, %v534
        %v543 = vmul.f32 %v522, %v530
        %v544 = vmul.f32 %v516, %v534
        %v545 = vmul.f32 %v523, %v530
        %v546 = vmul.f32 %v517, %v534
        %v547 = vmul.f32 %v524, %v530
        %v548 = vmul.f32 %v518, %v534
        %v549 = vpack.c.bf16 %v539, %v537
        %v550 = vpack.c.bf16 %v540, %v538
        %v551 = vpack.c.bf16 %v543, %v541
        %v552 = vpack.c.bf16 %v544, %v542
        %v553 = vpack.c.bf16 %v547, %v545
        %v554 = vpack.c.bf16 %v548, %v546
        %555 = vst [vmem:[#allocation2] sm:$0xff] %v549
        %556 = vst [vmem:[#allocation2 + $0x8] sm:$0xff] %v550
        %557 = vst [vmem:[#allocation2 + $0x90] sm:$0xff] %v551
        %558 = vst [vmem:[#allocation2 + $0x98] sm:$0xff] %v552
        %559 = vst [vmem:[#allocation2 + $0x120] sm:$0xff] %v553
        %560 = vst [vmem:[#allocation2 + $0x128] sm:$0xff] %v554
        %561 = vrot.lane.b32.xlu0 %v474, 16
        %v562 = vpop.permute.xlu0 %561
        %563 = vrot.lane.b32.xlu0 %v476, 16
        %v564 = vpop.permute.xlu0 %563
        %565 = vrot.lane.b32.xlu0 %v478, 16
        %v566 = vpop.permute.xlu0 %565
        %567 = vrot.lane.b32.xlu0 %v480, 16
        %v568 = vpop.permute.xlu0 %567
        %569 = vrot.lane.b32.xlu0 %v482, 16
        %v570 = vpop.permute.xlu0 %569
        %571 = vrot.lane.b32.xlu0 %v484, 16
        %v572 = vpop.permute.xlu0 %571
        %573 = vrot.lane.b32.xlu0 %v475, 16
        %v574 = vpop.permute.xlu0 %573
        %575 = vrot.lane.b32.xlu0 %v477, 16
        %v576 = vpop.permute.xlu0 %575
        %577 = vrot.lane.b32.xlu0 %v479, 16
        %v578 = vpop.permute.xlu0 %577
        %579 = vrot.lane.b32.xlu0 %v481, 16
        %v580 = vpop.permute.xlu0 %579
        %581 = vrot.lane.b32.xlu0 %v483, 16
        %v582 = vpop.permute.xlu0 %581
        %583 = vrot.lane.b32.xlu0 %v485, 16
        %v584 = vpop.permute.xlu0 %583
        %vm585 = vcmp.lt.s32.totalorder %v511, 16
        %v586 = vsel %vm585, %v562, %v574
        %v587 = vsel %vm585, %v564, %v576
        %v588 = vsel %vm585, %v566, %v578
        %v589 = vsel %vm585, %v568, %v580
        %v590 = vsel %vm585, %v570, %v582
        %v591 = vsel %vm585, %v572, %v584
        %v592 = vsel %vm585, %v574, %v562
        %v593 = vsel %vm585, %v576, %v564
        %v594 = vsel %vm585, %v578, %v566
        %v595 = vsel %vm585, %v580, %v568
        %v596 = vsel %vm585, %v582, %v570
        %v597 = vsel %vm585, %v584, %v572
        %s598 = scalar_lea.vmem [#allocation3], 1
        %v599 = vld [vmem:[%s598] ss:$8 sm:$0x3]
        %v601 = vlaneseq
        %v602 = vshrl.u32 %v601, 7
        %v603 = vsub.s32 0, %v602
        %v604 = vrot.slane %v599, %v603
        %v605 = vlaneseq
        %v606 = vshrl.u32 %v605, 7
        %v607 = vsub.s32 1, %v606
        %v608 = vrot.slane %v599, %v607
        %v611 = vmul.f32 %v592, %v604
        %v612 = vmul.f32 %v586, %v608
        %v613 = vmul.f32 %v593, %v604
        %v614 = vmul.f32 %v587, %v608
        %v615 = vmul.f32 %v594, %v604
        %v616 = vmul.f32 %v588, %v608
        %v617 = vmul.f32 %v595, %v604
        %v618 = vmul.f32 %v589, %v608
        %v619 = vmul.f32 %v596, %v604
        %v620 = vmul.f32 %v590, %v608
        %v621 = vmul.f32 %v597, %v604
        %v622 = vmul.f32 %v591, %v608
        %v623 = vpack.c.bf16 %v613, %v611
        %v624 = vpack.c.bf16 %v614, %v612
        %v625 = vpack.c.bf16 %v617, %v615
        %v626 = vpack.c.bf16 %v618, %v616
        %v627 = vpack.c.bf16 %v621, %v619
        %v628 = vpack.c.bf16 %v622, %v620
        %629 = vst [vmem:[#allocation2 + $0x10] sm:$0xff] %v623
        %630 = vst [vmem:[#allocation2 + $0x18] sm:$0xff] %v624
        %631 = vst [vmem:[#allocation2 + $0xa0] sm:$0xff] %v625
        %632 = vst [vmem:[#allocation2 + $0xa8] sm:$0xff] %v626
        %633 = vst [vmem:[#allocation2 + $0x130] sm:$0xff] %v627
        %634 = vst [vmem:[#allocation2 + $0x138] sm:$0xff] %v628
        %635 = vrot.lane.b32.xlu0 %v474, 15
        %v636 = vpop.permute.xlu0 %635
        %637 = vrot.lane.b32.xlu0 %v476, 15
        %v638 = vpop.permute.xlu0 %637
        %639 = vrot.lane.b32.xlu0 %v478, 15
        %v640 = vpop.permute.xlu0 %639
        %641 = vrot.lane.b32.xlu0 %v480, 15
        %v642 = vpop.permute.xlu0 %641
        %643 = vrot.lane.b32.xlu0 %v482, 15
        %v644 = vpop.permute.xlu0 %643
        %645 = vrot.lane.b32.xlu0 %v484, 15
        %v646 = vpop.permute.xlu0 %645
        %647 = vrot.lane.b32.xlu0 %v475, 15
        %v648 = vpop.permute.xlu0 %647
        %649 = vrot.lane.b32.xlu0 %v477, 15
        %v650 = vpop.permute.xlu0 %649
        %651 = vrot.lane.b32.xlu0 %v479, 15
        %v652 = vpop.permute.xlu0 %651
        %653 = vrot.lane.b32.xlu0 %v481, 15
        %v654 = vpop.permute.xlu0 %653
        %655 = vrot.lane.b32.xlu0 %v483, 15
        %v656 = vpop.permute.xlu0 %655
        %657 = vrot.lane.b32.xlu0 %v485, 15
        %v658 = vpop.permute.xlu0 %657
        %vm659 = vcmp.lt.s32.totalorder %v511, 15
        %v660 = vsel %vm659, %v636, %v648
        %v661 = vsel %vm659, %v638, %v650
        %v662 = vsel %vm659, %v640, %v652
        %v663 = vsel %vm659, %v642, %v654
        %v664 = vsel %vm659, %v644, %v656
        %v665 = vsel %vm659, %v646, %v658
        %v666 = vsel %vm659, %v648, %v636
        %v667 = vsel %vm659, %v650, %v638
        %v668 = vsel %vm659, %v652, %v640
        %v669 = vsel %vm659, %v654, %v642
        %v670 = vsel %vm659, %v656, %v644
        %v671 = vsel %vm659, %v658, %v646
        %s672 = scalar_lea.vmem [#allocation3], 2
        %v673 = vld [vmem:[%s672] ss:$8 sm:$0x3]
        %v675 = vlaneseq
        %v676 = vshrl.u32 %v675, 7
        %v677 = vsub.s32 0, %v676
        %v678 = vrot.slane %v673, %v677
        %v679 = vlaneseq
        %v680 = vshrl.u32 %v679, 7
        %v681 = vsub.s32 1, %v680
        %v682 = vrot.slane %v673, %v681
        %v685 = vmul.f32 %v666, %v678
        %v686 = vmul.f32 %v660, %v682
        %v687 = vmul.f32 %v667, %v678
        %v688 = vmul.f32 %v661, %v682
        %v689 = vmul.f32 %v668, %v678
        %v690 = vmul.f32 %v662, %v682
        %v691 = vmul.f32 %v669, %v678
        %v692 = vmul.f32 %v663, %v682
        %v693 = vmul.f32 %v670, %v678
        %v694 = vmul.f32 %v664, %v682
        %v695 = vmul.f32 %v671, %v678
        %v696 = vmul.f32 %v665, %v682
        %v697 = vpack.c.bf16 %v687, %v685
        %v698 = vpack.c.bf16 %v688, %v686
        %v699 = vpack.c.bf16 %v691, %v689
        %v700 = vpack.c.bf16 %v692, %v690
        %v701 = vpack.c.bf16 %v695, %v693
        %v702 = vpack.c.bf16 %v696, %v694
        %703 = vst [vmem:[#allocation2 + $0x20] sm:$0xff] %v697
        %704 = vst [vmem:[#allocation2 + $0x28] sm:$0xff] %v698
        %705 = vst [vmem:[#allocation2 + $0xb0] sm:$0xff] %v699
        %706 = vst [vmem:[#allocation2 + $0xb8] sm:$0xff] %v700
        %707 = vst [vmem:[#allocation2 + $0x140] sm:$0xff] %v701
        %708 = vst [vmem:[#allocation2 + $0x148] sm:$0xff] %v702
        %709 = vrot.lane.b32.xlu0 %v474, 1
        %v710 = vpop.permute.xlu0 %709
        %711 = vrot.lane.b32.xlu0 %v476, 1
        %v712 = vpop.permute.xlu0 %711
        %713 = vrot.lane.b32.xlu0 %v478, 1
        %v714 = vpop.permute.xlu0 %713
        %715 = vrot.lane.b32.xlu0 %v480, 1
        %v716 = vpop.permute.xlu0 %715
        %717 = vrot.lane.b32.xlu0 %v482, 1
        %v718 = vpop.permute.xlu0 %717
        %719 = vrot.lane.b32.xlu0 %v484, 1
        %v720 = vpop.permute.xlu0 %719
        %721 = vrot.lane.b32.xlu0 %v475, 1
        %v722 = vpop.permute.xlu0 %721
        %723 = vrot.lane.b32.xlu0 %v477, 1
        %v724 = vpop.permute.xlu0 %723
        %725 = vrot.lane.b32.xlu0 %v479, 1
        %v726 = vpop.permute.xlu0 %725
        %727 = vrot.lane.b32.xlu0 %v481, 1
        %v728 = vpop.permute.xlu0 %727
        %729 = vrot.lane.b32.xlu0 %v483, 1
        %v730 = vpop.permute.xlu0 %729
        %731 = vrot.lane.b32.xlu0 %v485, 1
        %v732 = vpop.permute.xlu0 %731
        %vm733 = vcmp.lt.s32.totalorder %v511, 1
        %v734 = vsel %vm733, %v710, %v722
        %v735 = vsel %vm733, %v712, %v724
        %v736 = vsel %vm733, %v714, %v726
        %v737 = vsel %vm733, %v716, %v728
        %v738 = vsel %vm733, %v718, %v730
        %v739 = vsel %vm733, %v720, %v732
        %v740 = vsel %vm733, %v722, %v710
        %v741 = vsel %vm733, %v724, %v712
        %v742 = vsel %vm733, %v726, %v714
        %v743 = vsel %vm733, %v728, %v716
        %v744 = vsel %vm733, %v730, %v718
        %v745 = vsel %vm733, %v732, %v720
        %s746 = scalar_lea.vmem [#allocation3], 3
        %v747 = vld [vmem:[%s746] ss:$8 sm:$0x3]
        %v749 = vlaneseq
        %v750 = vshrl.u32 %v749, 7
        %v751 = vsub.s32 0, %v750
        %v752 = vrot.slane %v747, %v751
        %v753 = vlaneseq
        %v754 = vshrl.u32 %v753, 7
        %v755 = vsub.s32 1, %v754
        %v756 = vrot.slane %v747, %v755
        %v759 = vmul.f32 %v740, %v752
        %v760 = vmul.f32 %v734, %v756
        %v761 = vmul.f32 %v741, %v752
        %v762 = vmul.f32 %v735, %v756
        %v763 = vmul.f32 %v742, %v752
        %v764 = vmul.f32 %v736, %v756
        %v765 = vmul.f32 %v743, %v752
        %v766 = vmul.f32 %v737, %v756
        %v767 = vmul.f32 %v744, %v752
        %v768 = vmul.f32 %v738, %v756
        %v769 = vmul.f32 %v745, %v752
        %v770 = vmul.f32 %v739, %v756
        %v771 = vpack.c.bf16 %v761, %v759
        %v772 = vpack.c.bf16 %v762, %v760
        %v773 = vpack.c.bf16 %v765, %v763
        %v774 = vpack.c.bf16 %v766, %v764
        %v775 = vpack.c.bf16 %v769, %v767
        %v776 = vpack.c.bf16 %v770, %v768
        %777 = vst [vmem:[#allocation2 + $0x30] sm:$0xff] %v771
        %778 = vst [vmem:[#allocation2 + $0x38] sm:$0xff] %v772
        %779 = vst [vmem:[#allocation2 + $0xc0] sm:$0xff] %v773
        %780 = vst [vmem:[#allocation2 + $0xc8] sm:$0xff] %v774
        %781 = vst [vmem:[#allocation2 + $0x150] sm:$0xff] %v775
        %782 = vst [vmem:[#allocation2 + $0x158] sm:$0xff] %v776
        %s783 = scalar_lea.vmem [#allocation3], 4
        %v784 = vld [vmem:[%s783] ss:$8 sm:$0x3]
        %v786 = vlaneseq
        %v787 = vshrl.u32 %v786, 7
        %v788 = vsub.s32 0, %v787
        %v789 = vrot.slane %v784, %v788
        %v790 = vlaneseq
        %v791 = vshrl.u32 %v790, 7
        %v792 = vsub.s32 1, %v791
        %v793 = vrot.slane %v784, %v792
        %v796 = vmul.f32 %v474, %v789
        %v797 = vmul.f32 %v475, %v793
        %v798 = vmul.f32 %v476, %v789
        %v799 = vmul.f32 %v477, %v793
        %v800 = vmul.f32 %v478, %v789
        %v801 = vmul.f32 %v479, %v793
        %v802 = vmul.f32 %v480, %v789
        %v803 = vmul.f32 %v481, %v793
        %v804 = vmul.f32 %v482, %v789
        %v805 = vmul.f32 %v483, %v793
        %v806 = vmul.f32 %v484, %v789
        %v807 = vmul.f32 %v485, %v793
        %v808 = vpack.c.bf16 %v798, %v796
        %v809 = vpack.c.bf16 %v799, %v797
        %v810 = vpack.c.bf16 %v802, %v800
        %v811 = vpack.c.bf16 %v803, %v801
        %v812 = vpack.c.bf16 %v806, %v804
        %v813 = vpack.c.bf16 %v807, %v805
        %814 = vst [vmem:[#allocation2 + $0x40] sm:$0xff] %v808
        %815 = vst [vmem:[#allocation2 + $0x48] sm:$0xff] %v809
        %816 = vst [vmem:[#allocation2 + $0xd0] sm:$0xff] %v810
        %817 = vst [vmem:[#allocation2 + $0xd8] sm:$0xff] %v811
        %818 = vst [vmem:[#allocation2 + $0x160] sm:$0xff] %v812
        %819 = vst [vmem:[#allocation2 + $0x168] sm:$0xff] %v813
        %820 = vrot.lane.b32.xlu0 %v474, 127
        %v821 = vpop.permute.xlu0 %820
        %822 = vrot.lane.b32.xlu0 %v476, 127
        %v823 = vpop.permute.xlu0 %822
        %824 = vrot.lane.b32.xlu0 %v478, 127
        %v825 = vpop.permute.xlu0 %824
        %826 = vrot.lane.b32.xlu0 %v480, 127
        %v827 = vpop.permute.xlu0 %826
        %828 = vrot.lane.b32.xlu0 %v482, 127
        %v829 = vpop.permute.xlu0 %828
        %830 = vrot.lane.b32.xlu0 %v484, 127
        %v831 = vpop.permute.xlu0 %830
        %832 = vrot.lane.b32.xlu0 %v475, 127
        %v833 = vpop.permute.xlu0 %832
        %834 = vrot.lane.b32.xlu0 %v477, 127
        %v835 = vpop.permute.xlu0 %834
        %836 = vrot.lane.b32.xlu0 %v479, 127
        %v837 = vpop.permute.xlu0 %836
        %838 = vrot.lane.b32.xlu0 %v481, 127
        %v839 = vpop.permute.xlu0 %838
        %840 = vrot.lane.b32.xlu0 %v483, 127
        %v841 = vpop.permute.xlu0 %840
        %842 = vrot.lane.b32.xlu0 %v485, 127
        %v843 = vpop.permute.xlu0 %842
        %vm844 = vcmp.lt.s32.totalorder %v511, 127
        %v845 = vsel %vm844, %v821, %v833
        %v846 = vsel %vm844, %v823, %v835
        %v847 = vsel %vm844, %v825, %v837
        %v848 = vsel %vm844, %v827, %v839
        %v849 = vsel %vm844, %v829, %v841
        %v850 = vsel %vm844, %v831, %v843
        %v851 = vsel %vm844, %v833, %v821
        %v852 = vsel %vm844, %v835, %v823
        %v853 = vsel %vm844, %v837, %v825
        %v854 = vsel %vm844, %v839, %v827
        %v855 = vsel %vm844, %v841, %v829
        %v856 = vsel %vm844, %v843, %v831
        %s857 = scalar_lea.vmem [#allocation3], 5
        %v858 = vld [vmem:[%s857] ss:$8 sm:$0x3]
        %v860 = vlaneseq
        %v861 = vshrl.u32 %v860, 7
        %v862 = vsub.s32 0, %v861
        %v863 = vrot.slane %v858, %v862
        %v864 = vlaneseq
        %v865 = vshrl.u32 %v864, 7
        %v866 = vsub.s32 1, %v865
        %v867 = vrot.slane %v858, %v866
        %v870 = vmul.f32 %v845, %v863
        %v871 = vmul.f32 %v851, %v867
        %v872 = vmul.f32 %v846, %v863
        %v873 = vmul.f32 %v852, %v867
        %v874 = vmul.f32 %v847, %v863
        %v875 = vmul.f32 %v853, %v867
        %v876 = vmul.f32 %v848, %v863
        %v877 = vmul.f32 %v854, %v867
        %v878 = vmul.f32 %v849, %v863
        %v879 = vmul.f32 %v855, %v867
        %v880 = vmul.f32 %v850, %v863
        %v881 = vmul.f32 %v856, %v867
        %v882 = vpack.c.bf16 %v872, %v870
        %v883 = vpack.c.bf16 %v873, %v871
        %v884 = vpack.c.bf16 %v876, %v874
        %v885 = vpack.c.bf16 %v877, %v875
        %v886 = vpack.c.bf16 %v880, %v878
        %v887 = vpack.c.bf16 %v881, %v879
        %888 = vst [vmem:[#allocation2 + $0x50] sm:$0xff] %v882
        %889 = vst [vmem:[#allocation2 + $0x58] sm:$0xff] %v883
        %890 = vst [vmem:[#allocation2 + $0xe0] sm:$0xff] %v884
        %891 = vst [vmem:[#allocation2 + $0xe8] sm:$0xff] %v885
        %892 = vst [vmem:[#allocation2 + $0x170] sm:$0xff] %v886
        %893 = vst [vmem:[#allocation2 + $0x178] sm:$0xff] %v887
        %894 = vrot.lane.b32.xlu0 %v474, 113
        %v895 = vpop.permute.xlu0 %894
        %896 = vrot.lane.b32.xlu0 %v476, 113
        %v897 = vpop.permute.xlu0 %896
        %898 = vrot.lane.b32.xlu0 %v478, 113
        %v899 = vpop.permute.xlu0 %898
        %900 = vrot.lane.b32.xlu0 %v480, 113
        %v901 = vpop.permute.xlu0 %900
        %902 = vrot.lane.b32.xlu0 %v482, 113
        %v903 = vpop.permute.xlu0 %902
        %904 = vrot.lane.b32.xlu0 %v484, 113
        %v905 = vpop.permute.xlu0 %904
        %906 = vrot.lane.b32.xlu0 %v475, 113
        %v907 = vpop.permute.xlu0 %906
        %908 = vrot.lane.b32.xlu0 %v477, 113
        %v909 = vpop.permute.xlu0 %908
        %910 = vrot.lane.b32.xlu0 %v479, 113
        %v911 = vpop.permute.xlu0 %910
        %912 = vrot.lane.b32.xlu0 %v481, 113
        %v913 = vpop.permute.xlu0 %912
        %914 = vrot.lane.b32.xlu0 %v483, 113
        %v915 = vpop.permute.xlu0 %914
        %916 = vrot.lane.b32.xlu0 %v485, 113
        %v917 = vpop.permute.xlu0 %916
        %vm918 = vcmp.lt.s32.totalorder %v511, 113
        %v919 = vsel %vm918, %v895, %v907
        %v920 = vsel %vm918, %v897, %v909
        %v921 = vsel %vm918, %v899, %v911
        %v922 = vsel %vm918, %v901, %v913
        %v923 = vsel %vm918, %v903, %v915
        %v924 = vsel %vm918, %v905, %v917
        %v925 = vsel %vm918, %v907, %v895
        %v926 = vsel %vm918, %v909, %v897
        %v927 = vsel %vm918, %v911, %v899
        %v928 = vsel %vm918, %v913, %v901
        %v929 = vsel %vm918, %v915, %v903
        %v930 = vsel %vm918, %v917, %v905
        %s931 = scalar_lea.vmem [#allocation3], 6
        %v932 = vld [vmem:[%s931] ss:$8 sm:$0x3]
        %v934 = vlaneseq
        %v935 = vshrl.u32 %v934, 7
        %v936 = vsub.s32 0, %v935
        %v937 = vrot.slane %v932, %v936
        %v938 = vlaneseq
        %v939 = vshrl.u32 %v938, 7
        %v940 = vsub.s32 1, %v939
        %v941 = vrot.slane %v932, %v940
        %v944 = vmul.f32 %v919, %v937
        %v945 = vmul.f32 %v925, %v941
        %v946 = vmul.f32 %v920, %v937
        %v947 = vmul.f32 %v926, %v941
        %v948 = vmul.f32 %v921, %v937
        %v949 = vmul.f32 %v927, %v941
        %v950 = vmul.f32 %v922, %v937
        %v951 = vmul.f32 %v928, %v941
        %v952 = vmul.f32 %v923, %v937
        %v953 = vmul.f32 %v929, %v941
        %v954 = vmul.f32 %v924, %v937
        %v955 = vmul.f32 %v930, %v941
        %v956 = vpack.c.bf16 %v946, %v944
        %v957 = vpack.c.bf16 %v947, %v945
        %v958 = vpack.c.bf16 %v950, %v948
        %v959 = vpack.c.bf16 %v951, %v949
        %v960 = vpack.c.bf16 %v954, %v952
        %v961 = vpack.c.bf16 %v955, %v953
        %962 = vst [vmem:[#allocation2 + $0x60] sm:$0xff] %v956
        %963 = vst [vmem:[#allocation2 + $0x68] sm:$0xff] %v957
        %964 = vst [vmem:[#allocation2 + $0xf0] sm:$0xff] %v958
        %965 = vst [vmem:[#allocation2 + $0xf8] sm:$0xff] %v959
        %966 = vst [vmem:[#allocation2 + $0x180] sm:$0xff] %v960
        %967 = vst [vmem:[#allocation2 + $0x188] sm:$0xff] %v961
        %968 = vrot.lane.b32.xlu0 %v474, 112
        %v969 = vpop.permute.xlu0 %968
        %970 = vrot.lane.b32.xlu0 %v476, 112
        %v971 = vpop.permute.xlu0 %970
        %972 = vrot.lane.b32.xlu0 %v478, 112
        %v973 = vpop.permute.xlu0 %972
        %974 = vrot.lane.b32.xlu0 %v480, 112
        %v975 = vpop.permute.xlu0 %974
        %976 = vrot.lane.b32.xlu0 %v482, 112
        %v977 = vpop.permute.xlu0 %976
        %978 = vrot.lane.b32.xlu0 %v484, 112
        %v979 = vpop.permute.xlu0 %978
        %980 = vrot.lane.b32.xlu0 %v475, 112
        %v981 = vpop.permute.xlu0 %980
        %982 = vrot.lane.b32.xlu0 %v477, 112
        %v983 = vpop.permute.xlu0 %982
        %984 = vrot.lane.b32.xlu0 %v479, 112
        %v985 = vpop.permute.xlu0 %984
        %986 = vrot.lane.b32.xlu0 %v481, 112
        %v987 = vpop.permute.xlu0 %986
        %988 = vrot.lane.b32.xlu0 %v483, 112
        %v989 = vpop.permute.xlu0 %988
        %990 = vrot.lane.b32.xlu0 %v485, 112
        %v991 = vpop.permute.xlu0 %990
        %vm992 = vcmp.lt.s32.totalorder %v511, 112
        %v993 = vsel %vm992, %v969, %v981
        %v994 = vsel %vm992, %v971, %v983
        %v995 = vsel %vm992, %v973, %v985
        %v996 = vsel %vm992, %v975, %v987
        %v997 = vsel %vm992, %v977, %v989
        %v998 = vsel %vm992, %v979, %v991
        %v999 = vsel %vm992, %v981, %v969
        %v1000 = vsel %vm992, %v983, %v971
        %v1001 = vsel %vm992, %v985, %v973
        %v1002 = vsel %vm992, %v987, %v975
        %v1003 = vsel %vm992, %v989, %v977
        %v1004 = vsel %vm992, %v991, %v979
        %s1005 = scalar_lea.vmem [#allocation3], 7
        %v1006 = vld [vmem:[%s1005] ss:$8 sm:$0x3]
        %v1008 = vlaneseq
        %v1009 = vshrl.u32 %v1008, 7
        %v1010 = vsub.s32 0, %v1009
        %v1011 = vrot.slane %v1006, %v1010
        %v1012 = vlaneseq
        %v1013 = vshrl.u32 %v1012, 7
        %v1014 = vsub.s32 1, %v1013
        %v1015 = vrot.slane %v1006, %v1014
        %v1018 = vmul.f32 %v993, %v1011
        %v1019 = vmul.f32 %v999, %v1015
        %v1020 = vmul.f32 %v994, %v1011
        %v1021 = vmul.f32 %v1000, %v1015
        %v1022 = vmul.f32 %v995, %v1011
        %v1023 = vmul.f32 %v1001, %v1015
        %v1024 = vmul.f32 %v996, %v1011
        %v1025 = vmul.f32 %v1002, %v1015
        %v1026 = vmul.f32 %v997, %v1011
        %v1027 = vmul.f32 %v1003, %v1015
        %v1028 = vmul.f32 %v998, %v1011
        %v1029 = vmul.f32 %v1004, %v1015
        %v1030 = vpack.c.bf16 %v1020, %v1018
        %v1031 = vpack.c.bf16 %v1021, %v1019
        %v1032 = vpack.c.bf16 %v1024, %v1022
        %v1033 = vpack.c.bf16 %v1025, %v1023
        %v1034 = vpack.c.bf16 %v1028, %v1026
        %v1035 = vpack.c.bf16 %v1029, %v1027
        %1036 = vst [vmem:[#allocation2 + $0x70] sm:$0xff] %v1030
        %1037 = vst [vmem:[#allocation2 + $0x78] sm:$0xff] %v1031
        %1038 = vst [vmem:[#allocation2 + $0x100] sm:$0xff] %v1032
        %1039 = vst [vmem:[#allocation2 + $0x108] sm:$0xff] %v1033
        %1040 = vst [vmem:[#allocation2 + $0x190] sm:$0xff] %v1034
        %1041 = vst [vmem:[#allocation2 + $0x198] sm:$0xff] %v1035
        %1042 = vrot.lane.b32.xlu0 %v474, 111
        %v1043 = vpop.permute.xlu0 %1042
        %1044 = vrot.lane.b32.xlu0 %v476, 111
        %v1045 = vpop.permute.xlu0 %1044
        %1046 = vrot.lane.b32.xlu0 %v478, 111
        %v1047 = vpop.permute.xlu0 %1046
        %1048 = vrot.lane.b32.xlu0 %v480, 111
        %v1049 = vpop.permute.xlu0 %1048
        %1050 = vrot.lane.b32.xlu0 %v482, 111
        %v1051 = vpop.permute.xlu0 %1050
        %1052 = vrot.lane.b32.xlu0 %v484, 111
        %v1053 = vpop.permute.xlu0 %1052
        %1054 = vrot.lane.b32.xlu0 %v475, 111
        %v1055 = vpop.permute.xlu0 %1054
        %1056 = vrot.lane.b32.xlu0 %v477, 111
        %v1057 = vpop.permute.xlu0 %1056
        %1058 = vrot.lane.b32.xlu0 %v479, 111
        %v1059 = vpop.permute.xlu0 %1058
        %1060 = vrot.lane.b32.xlu0 %v481, 111
        %v1061 = vpop.permute.xlu0 %1060
        %1062 = vrot.lane.b32.xlu0 %v483, 111
        %v1063 = vpop.permute.xlu0 %1062
        %1064 = vrot.lane.b32.xlu0 %v485, 111
        %v1065 = vpop.permute.xlu0 %1064
        %vm1066 = vcmp.lt.s32.totalorder %v511, 111
        %v1067 = vsel %vm1066, %v1043, %v1055
        %v1068 = vsel %vm1066, %v1045, %v1057
        %v1069 = vsel %vm1066, %v1047, %v1059
        %v1070 = vsel %vm1066, %v1049, %v1061
        %v1071 = vsel %vm1066, %v1051, %v1063
        %v1072 = vsel %vm1066, %v1053, %v1065
        %v1073 = vsel %vm1066, %v1055, %v1043
        %v1074 = vsel %vm1066, %v1057, %v1045
        %v1075 = vsel %vm1066, %v1059, %v1047
        %v1076 = vsel %vm1066, %v1061, %v1049
        %v1077 = vsel %vm1066, %v1063, %v1051
        %v1078 = vsel %vm1066, %v1065, %v1053
        %s1079 = scalar_lea.vmem [#allocation3], 16
        %v1080 = vld [vmem:[%s1079] ss:$8 sm:$0x3]
        %v1082 = vlaneseq
        %v1083 = vshrl.u32 %v1082, 7
        %v1084 = vsub.s32 0, %v1083
        %v1085 = vrot.slane %v1080, %v1084
        %v1086 = vlaneseq
        %v1087 = vshrl.u32 %v1086, 7
        %v1088 = vsub.s32 1, %v1087
        %v1089 = vrot.slane %v1080, %v1088
        %v1092 = vmul.f32 %v1067, %v1085
        %v1093 = vmul.f32 %v1073, %v1089
        %v1094 = vmul.f32 %v1068, %v1085
        %v1095 = vmul.f32 %v1074, %v1089
        %v1096 = vmul.f32 %v1069, %v1085
        %v1097 = vmul.f32 %v1075, %v1089
        %v1098 = vmul.f32 %v1070, %v1085
        %v1099 = vmul.f32 %v1076, %v1089
        %v1100 = vmul.f32 %v1071, %v1085
        %v1101 = vmul.f32 %v1077, %v1089
        %v1102 = vmul.f32 %v1072, %v1085
        %v1103 = vmul.f32 %v1078, %v1089
        %v1104 = vpack.c.bf16 %v1094, %v1092
        %v1105 = vpack.c.bf16 %v1095, %v1093
        %v1106 = vpack.c.bf16 %v1098, %v1096
        %v1107 = vpack.c.bf16 %v1099, %v1097
        %v1108 = vpack.c.bf16 %v1102, %v1100
        %v1109 = vpack.c.bf16 %v1103, %v1101
        %1110 = vst [vmem:[#allocation2 + $0x80] sm:$0xff] %v1104
        %1111 = vst [vmem:[#allocation2 + $0x88] sm:$0xff] %v1105
        %1112 = vst [vmem:[#allocation2 + $0x110] sm:$0xff] %v1106
        %1113 = vst [vmem:[#allocation2 + $0x118] sm:$0xff] %v1107
        %1114 = vst [vmem:[#allocation2 + $0x1a0] sm:$0xff] %v1108
        %1115 = vst [vmem:[#allocation2 + $0x1a8] sm:$0xff] %v1109
        %v1116 = vld [vmem:[#allocation6] sm:$0xff]
        %v1117 = vld [vmem:[#allocation6 + $0x8] sm:$0xff]
        %v1118 = vld [vmem:[#allocation2] sm:$0xff]
        %v1119 = vld [vmem:[#allocation2 + $0x8] sm:$0xff]
        %v1120 = vld [vmem:[#allocation2 + $0x10] sm:$0xff]
        %v1121 = vld [vmem:[#allocation2 + $0x18] sm:$0xff]
        %v1122 = vld [vmem:[#allocation2 + $0x20] sm:$0xff]
        %v1123 = vld [vmem:[#allocation2 + $0x28] sm:$0xff]
        %v1124 = vld [vmem:[#allocation2 + $0x30] sm:$0xff]
        %v1125 = vld [vmem:[#allocation2 + $0x38] sm:$0xff]
        %v1126 = vld [vmem:[#allocation2 + $0x40] sm:$0xff]
        %v1127 = vld [vmem:[#allocation2 + $0x48] sm:$0xff]
        %v1128 = vld [vmem:[#allocation2 + $0x50] sm:$0xff]
        %v1129 = vld [vmem:[#allocation2 + $0x58] sm:$0xff]
        %v1130 = vld [vmem:[#allocation2 + $0x60] sm:$0xff]
        %v1131 = vld [vmem:[#allocation2 + $0x68] sm:$0xff]
        %v1132 = vld [vmem:[#allocation2 + $0x70] sm:$0xff]
        %v1133 = vld [vmem:[#allocation2 + $0x78] sm:$0xff]
        %v1134 = vld [vmem:[#allocation2 + $0x80] sm:$0xff]
        %v1135 = vld [vmem:[#allocation2 + $0x88] sm:$0xff]
        %v1136 = vld [vmem:[%s5] sm:$0xff]
        %v1137 = vld [vmem:[%s5 + $0x8] sm:$0xff]
        %1139 = vset.pattern.permute.xlu0 0
        %1140 = vperm.xlu0 %1139, %v1136
        %v1141 = vpop.permute.xlu0 %1140
        %1144 = vset.pattern.permute.xlu0 0
        %1145 = vperm.xlu0 %1144, %v1137
        %v1146 = vpop.permute.xlu0 %1145
        %v1150 = vunpack.c.l.b16 %v1116
        %v1151 = vunpack.c.h.b16 %v1116
        %v1152 = vunpack.c.l.b16 %v1117
        %v1153 = vunpack.c.h.b16 %v1117
        %v1154 = vpack.c.b16 %v1152, %v1150
        %v1155 = vpack.c.b16 %v1153, %v1151
        %vm1157 = vcmask 130048
        %v1159 = vsel %vm1157, %v1155, 0
        %1161 = vmatprep.subr.bf16.mxu0 %v1119
        %1162 = vmatpush1.bf16.msra.mxu0 %v1118
        %1163 = vmatprep.subr.bf16.mxu0 %v1121
        %1164 = vmatpush1.bf16.msra.mxu0 %v1120
        %1165 = vmatprep.subr.bf16.mxu0 %v1123
        %1166 = vmatpush1.bf16.msra.mxu0 %v1122
        %1167 = vmatprep.subr.bf16.mxu0 %v1125
        %1168 = vmatpush1.bf16.msra.mxu0 %v1124
        %1169 = vmatprep.subr.bf16.mxu0 %v1127
        %1170 = vmatpush1.bf16.msra.mxu0 %v1126
        %1171 = vmatprep.subr.bf16.mxu0 %v1129
        %1172 = vmatpush1.bf16.msra.mxu0 %v1128
        %1173 = vmatprep.subr.bf16.mxu0 %v1131
        %1174 = vmatpush1.bf16.msra.mxu0 %v1130
        %1175 = vmatprep.subr.bf16.mxu0 %v1133
        %1176 = vmatpush1.bf16.msra.mxu0 %v1132
        %1177 = vmatprep.subr.bf16.mxu0 %v1135
        %1178 = vmatpush1.bf16.msra.mxu0 %v1134
        %1179 = vmatprep.subr.bf16.mxu0 0
        %1180 = vmatpush1.bf16.msra.mxu0 0
        %1181 = vmatprep.subr.bf16.mxu0 0
        %1182 = vmatpush1.bf16.msra.mxu0 0
        %1183 = vmatprep.subr.bf16.mxu0 0
        %1184 = vmatpush1.bf16.msra.mxu0 0
        %1185 = vmatprep.subr.bf16.mxu0 0
        %1186 = vmatpush1.bf16.msra.mxu0 0
        %1187 = vmatprep.subr.bf16.mxu0 0
        %1188 = vmatpush1.bf16.msra.mxu0 0
        %1189 = vmatprep.subr.bf16.mxu0 0
        %1190 = vmatpush1.bf16.msra.mxu0 0
        %1191 = vmatprep.subr.bf16.mxu0 0
        %1192 = vmatpush1.bf16.msra.mxu0 0
        %1193 = vmatprep.mubr.bf16.mxu0 %v1159
        %1194 = vmatmul.mubr.bf16.gmra.mrb[0].mxu0 %v1154
        %v1195 = vpop.f32.mrb[0].mxu0
        %v1196 = vadd.f32 %v1141, %v1195
        %v1197 = vpop.f32.mrb[0].mxu0
        %v1198 = vadd.f32 %v1141, %v1197
        %v1199 = vpop.f32.mrb[0].mxu0
        %v1200 = vadd.f32 %v1146, %v1199
        %v1201 = vpop.f32.mrb[0].mxu0
        %v1202 = vadd.f32 %v1146, %v1201
        %1203 = vdwg.mxu0
        %vm1204 = vcmp.ge.f32.partialorder %v1196, 0.0
        %vm1205 = vcmp.ge.f32.partialorder %v1198, 0.0
        %vm1206 = vcmp.ge.f32.partialorder %v1200, 0.0
        %vm1207 = vcmp.ge.f32.partialorder %v1202, 0.0
        %v1208 = vmul.f32 %v1196, 0.2
        %v1209 = vmul.f32 %v1198, 0.2
        %v1210 = vmul.f32 %v1200, 0.2
        %v1211 = vmul.f32 %v1202, 0.2
        %v1212 = vsel %vm1204, %v1196, %v1208
        %v1213 = vsel %vm1205, %v1198, %v1209
        %v1214 = vsel %vm1206, %v1200, %v1210
        %v1215 = vsel %vm1207, %v1202, %v1211
        %v1216 = vpack.c.bf16 %v1214, %v1212
        %v1217 = vpack.c.bf16 %v1215, %v1213
        %v1218 = vld [vmem:[#allocation6 + $0x10] sm:$0xff]
        %v1219 = vld [vmem:[#allocation6 + $0x18] sm:$0xff]
        %v1220 = vld [vmem:[#allocation2 + $0x90] sm:$0xff]
        %v1221 = vld [vmem:[#allocation2 + $0x98] sm:$0xff]
        %v1222 = vld [vmem:[#allocation2 + $0xa0] sm:$0xff]
        %v1223 = vld [vmem:[#allocation2 + $0xa8] sm:$0xff]
        %v1224 = vld [vmem:[#allocation2 + $0xb0] sm:$0xff]
        %v1225 = vld [vmem:[#allocation2 + $0xb8] sm:$0xff]
        %v1226 = vld [vmem:[#allocation2 + $0xc0] sm:$0xff]
        %v1227 = vld [vmem:[#allocation2 + $0xc8] sm:$0xff]
        %v1228 = vld [vmem:[#allocation2 + $0xd0] sm:$0xff]
        %v1229 = vld [vmem:[#allocation2 + $0xd8] sm:$0xff]
        %v1230 = vld [vmem:[#allocation2 + $0xe0] sm:$0xff]
        %v1231 = vld [vmem:[#allocation2 + $0xe8] sm:$0xff]
        %v1232 = vld [vmem:[#allocation2 + $0xf0] sm:$0xff]
        %v1233 = vld [vmem:[#allocation2 + $0xf8] sm:$0xff]
        %v1234 = vld [vmem:[#allocation2 + $0x100] sm:$0xff]
        %v1235 = vld [vmem:[#allocation2 + $0x108] sm:$0xff]
        %v1236 = vld [vmem:[#allocation2 + $0x110] sm:$0xff]
        %v1237 = vld [vmem:[#allocation2 + $0x118] sm:$0xff]
        %v1238 = vld [vmem:[%s5 + $0x10] sm:$0xff]
        %v1239 = vld [vmem:[%s5 + $0x18] sm:$0xff]
        %1241 = vset.pattern.permute.xlu0 0
        %1242 = vperm.xlu0 %1241, %v1238
        %v1243 = vpop.permute.xlu0 %1242
        %1246 = vset.pattern.permute.xlu0 0
        %1247 = vperm.xlu0 %1246, %v1239
        %v1248 = vpop.permute.xlu0 %1247
        %v1252 = vunpack.c.l.b16 %v1218
        %v1253 = vunpack.c.h.b16 %v1218
        %v1254 = vunpack.c.l.b16 %v1219
        %v1255 = vunpack.c.h.b16 %v1219
        %v1256 = vpack.c.b16 %v1254, %v1252
        %v1257 = vpack.c.b16 %v1255, %v1253
        %v1260 = vsel %vm1157, %v1257, 0
        %1262 = vmatprep.subr.bf16.mxu0 %v1221
        %1263 = vmatpush1.bf16.msra.mxu0 %v1220
        %1264 = vmatprep.subr.bf16.mxu0 %v1223
        %1265 = vmatpush1.bf16.msra.mxu0 %v1222
        %1266 = vmatprep.subr.bf16.mxu0 %v1225
        %1267 = vmatpush1.bf16.msra.mxu0 %v1224
        %1268 = vmatprep.subr.bf16.mxu0 %v1227
        %1269 = vmatpush1.bf16.msra.mxu0 %v1226
        %1270 = vmatprep.subr.bf16.mxu0 %v1229
        %1271 = vmatpush1.bf16.msra.mxu0 %v1228
        %1272 = vmatprep.subr.bf16.mxu0 %v1231
        %1273 = vmatpush1.bf16.msra.mxu0 %v1230
        %1274 = vmatprep.subr.bf16.mxu0 %v1233
        %1275 = vmatpush1.bf16.msra.mxu0 %v1232
        %1276 = vmatprep.subr.bf16.mxu0 %v1235
        %1277 = vmatpush1.bf16.msra.mxu0 %v1234
        %1278 = vmatprep.subr.bf16.mxu0 %v1237
        %1279 = vmatpush1.bf16.msra.mxu0 %v1236
        %1280 = vmatprep.subr.bf16.mxu0 0
        %1281 = vmatpush1.bf16.msra.mxu0 0
        %1282 = vmatprep.subr.bf16.mxu0 0
        %1283 = vmatpush1.bf16.msra.mxu0 0
        %1284 = vmatprep.subr.bf16.mxu0 0
        %1285 = vmatpush1.bf16.msra.mxu0 0
        %1286 = vmatprep.subr.bf16.mxu0 0
        %1287 = vmatpush1.bf16.msra.mxu0 0
        %1288 = vmatprep.subr.bf16.mxu0 0
        %1289 = vmatpush1.bf16.msra.mxu0 0
        %1290 = vmatprep.subr.bf16.mxu0 0
        %1291 = vmatpush1.bf16.msra.mxu0 0
        %1292 = vmatprep.subr.bf16.mxu0 0
        %1293 = vmatpush1.bf16.msra.mxu0 0
        %1294 = vmatprep.mubr.bf16.mxu0 %v1260
        %1295 = vmatmul.mubr.bf16.gmra.mrb[0].mxu0 %v1256
        %v1296 = vpop.f32.mrb[0].mxu0
        %v1297 = vadd.f32 %v1243, %v1296
        %v1298 = vpop.f32.mrb[0].mxu0
        %v1299 = vadd.f32 %v1243, %v1298
        %v1300 = vpop.f32.mrb[0].mxu0
        %v1301 = vadd.f32 %v1248, %v1300
        %v1302 = vpop.f32.mrb[0].mxu0
        %v1303 = vadd.f32 %v1248, %v1302
        %1304 = vdwg.mxu0
        %vm1305 = vcmp.ge.f32.partialorder %v1297, 0.0
        %vm1306 = vcmp.ge.f32.partialorder %v1299, 0.0
        %vm1307 = vcmp.ge.f32.partialorder %v1301, 0.0
        %vm1308 = vcmp.ge.f32.partialorder %v1303, 0.0
        %v1309 = vmul.f32 %v1297, 0.2
        %v1310 = vmul.f32 %v1299, 0.2
        %v1311 = vmul.f32 %v1301, 0.2
        %v1312 = vmul.f32 %v1303, 0.2
        %v1313 = vsel %vm1305, %v1297, %v1309
        %v1314 = vsel %vm1306, %v1299, %v1310
        %v1315 = vsel %vm1307, %v1301, %v1311
        %v1316 = vsel %vm1308, %v1303, %v1312
        %v1317 = vpack.c.bf16 %v1315, %v1313
        %v1318 = vpack.c.bf16 %v1316, %v1314
        %v1319 = vld [vmem:[#allocation6 + $0x20] sm:$0xff]
        %v1320 = vld [vmem:[#allocation6 + $0x28] sm:$0xff]
        %v1321 = vld [vmem:[#allocation2 + $0x120] sm:$0xff]
        %v1322 = vld [vmem:[#allocation2 + $0x128] sm:$0xff]
        %v1323 = vld [vmem:[#allocation2 + $0x130] sm:$0xff]
        %v1324 = vld [vmem:[#allocation2 + $0x138] sm:$0xff]
        %v1325 = vld [vmem:[#allocation2 + $0x140] sm:$0xff]
        %v1326 = vld [vmem:[#allocation2 + $0x148] sm:$0xff]
        %v1327 = vld [vmem:[#allocation2 + $0x150] sm:$0xff]
        %v1328 = vld [vmem:[#allocation2 + $0x158] sm:$0xff]
        %v1329 = vld [vmem:[#allocation2 + $0x160] sm:$0xff]
        %v1330 = vld [vmem:[#allocation2 + $0x168] sm:$0xff]
        %v1331 = vld [vmem:[#allocation2 + $0x170] sm:$0xff]
        %v1332 = vld [vmem:[#allocation2 + $0x178] sm:$0xff]
        %v1333 = vld [vmem:[#allocation2 + $0x180] sm:$0xff]
        %v1334 = vld [vmem:[#allocation2 + $0x188] sm:$0xff]
        %v1335 = vld [vmem:[#allocation2 + $0x190] sm:$0xff]
        %v1336 = vld [vmem:[#allocation2 + $0x198] sm:$0xff]
        %v1337 = vld [vmem:[#allocation2 + $0x1a0] sm:$0xff]
        %v1338 = vld [vmem:[#allocation2 + $0x1a8] sm:$0xff]
        %v1339 = vld [vmem:[%s5 + $0x20] sm:$0xff]
        %v1340 = vld [vmem:[%s5 + $0x28] sm:$0xff]
        %1342 = vset.pattern.permute.xlu0 0
        %1343 = vperm.xlu0 %1342, %v1339
        %v1344 = vpop.permute.xlu0 %1343
        %1347 = vset.pattern.permute.xlu0 0
        %1348 = vperm.xlu0 %1347, %v1340
        %v1349 = vpop.permute.xlu0 %1348
        %v1353 = vunpack.c.l.b16 %v1319
        %v1354 = vunpack.c.h.b16 %v1319
        %v1355 = vunpack.c.l.b16 %v1320
        %v1356 = vunpack.c.h.b16 %v1320
        %v1357 = vpack.c.b16 %v1355, %v1353
        %v1358 = vpack.c.b16 %v1356, %v1354
        %v1361 = vsel %vm1157, %v1358, 0
        %1363 = vmatprep.subr.bf16.mxu0 %v1322
        %1364 = vmatpush1.bf16.msra.mxu0 %v1321
        %1365 = vmatprep.subr.bf16.mxu0 %v1324
        %1366 = vmatpush1.bf16.msra.mxu0 %v1323
        %1367 = vmatprep.subr.bf16.mxu0 %v1326
        %1368 = vmatpush1.bf16.msra.mxu0 %v1325
        %1369 = vmatprep.subr.bf16.mxu0 %v1328
        %1370 = vmatpush1.bf16.msra.mxu0 %v1327
        %1371 = vmatprep.subr.bf16.mxu0 %v1330
        %1372 = vmatpush1.bf16.msra.mxu0 %v1329
        %1373 = vmatprep.subr.bf16.mxu0 %v1332
        %1374 = vmatpush1.bf16.msra.mxu0 %v1331
        %1375 = vmatprep.subr.bf16.mxu0 %v1334
        %1376 = vmatpush1.bf16.msra.mxu0 %v1333
        %1377 = vmatprep.subr.bf16.mxu0 %v1336
        %1378 = vmatpush1.bf16.msra.mxu0 %v1335
        %1379 = vmatprep.subr.bf16.mxu0 %v1338
        %1380 = vmatpush1.bf16.msra.mxu0 %v1337
        %1381 = vmatprep.subr.bf16.mxu0 0
        %1382 = vmatpush1.bf16.msra.mxu0 0
        %1383 = vmatprep.subr.bf16.mxu0 0
        %1384 = vmatpush1.bf16.msra.mxu0 0
        %1385 = vmatprep.subr.bf16.mxu0 0
        %1386 = vmatpush1.bf16.msra.mxu0 0
        %1387 = vmatprep.subr.bf16.mxu0 0
        %1388 = vmatpush1.bf16.msra.mxu0 0
        %1389 = vmatprep.subr.bf16.mxu0 0
        %1390 = vmatpush1.bf16.msra.mxu0 0
        %1391 = vmatprep.subr.bf16.mxu0 0
        %1392 = vmatpush1.bf16.msra.mxu0 0
        %1393 = vmatprep.subr.bf16.mxu0 0
        %1394 = vmatpush1.bf16.msra.mxu0 0
        %1395 = vmatprep.mubr.bf16.mxu0 %v1361
        %1396 = vmatmul.mubr.bf16.gmra.mrb[0].mxu0 %v1357
        %v1397 = vpop.f32.mrb[0].mxu0
        %v1398 = vadd.f32 %v1344, %v1397
        %v1399 = vpop.f32.mrb[0].mxu0
        %v1400 = vadd.f32 %v1344, %v1399
        %v1401 = vpop.f32.mrb[0].mxu0
        %v1402 = vadd.f32 %v1349, %v1401
        %v1403 = vpop.f32.mrb[0].mxu0
        %v1404 = vadd.f32 %v1349, %v1403
        %1405 = vdwg.mxu0
        %vm1406 = vcmp.ge.f32.partialorder %v1398, 0.0
        %vm1407 = vcmp.ge.f32.partialorder %v1400, 0.0
        %vm1408 = vcmp.ge.f32.partialorder %v1402, 0.0
        %vm1409 = vcmp.ge.f32.partialorder %v1404, 0.0
        %v1410 = vmul.f32 %v1398, 0.2
        %v1411 = vmul.f32 %v1400, 0.2
        %v1412 = vmul.f32 %v1402, 0.2
        %v1413 = vmul.f32 %v1404, 0.2
        %v1414 = vsel %vm1406, %v1398, %v1410
        %v1415 = vsel %vm1407, %v1400, %v1411
        %v1416 = vsel %vm1408, %v1402, %v1412
        %v1417 = vsel %vm1409, %v1404, %v1413
        %v1418 = vpack.c.bf16 %v1416, %v1414
        %v1419 = vpack.c.bf16 %v1417, %v1415
        %v1420 = vld [vmem:[%s6] sm:$0xf]
        %v1421 = vld [vmem:[%s6 + $0x4] sm:$0xf]
        %v1422 = vld [vmem:[%s6 + $0x8] sm:$0xf]
        %v1423 = vld [vmem:[%s6 + $0xc] sm:$0xf]
        %v1428 = vunpack.c.l.b16 %v1420
        %v1429 = vunpack.c.l.b16 %v1421
        %v1430 = vunpack.c.l.b16 %v1422
        %v1431 = vunpack.c.l.b16 %v1423
        %v1432 = vpack.c.b16 %v1429, %v1428
        %v1433 = vpack.c.b16 %v1431, %v1430
        %vm1434 = vcmask 392192
        %v1436 = vsel %vm1434, %v1432, 0
        %v1439 = vsel %vm1434, %v1433, 0
        %1441 = vmatprep.subr.bf16.mxu0 %v1217
        %1442 = vmatpush1.bf16.msra.mxu0 %v1216
        %1443 = vmatprep.subr.bf16.mxu0 %v1318
        %1444 = vmatpush1.bf16.msra.mxu0 %v1317
        %1445 = vmatprep.subr.bf16.mxu0 %v1419
        %1446 = vmatpush1.bf16.msra.mxu0 %v1418
        %1447 = vmatprep.subr.bf16.mxu0 0
        %1448 = vmatpush1.bf16.msra.mxu0 0
        %1449 = vmatprep.subr.bf16.mxu0 0
        %1450 = vmatpush1.bf16.msra.mxu0 0
        %1451 = vmatprep.subr.bf16.mxu0 0
        %1452 = vmatpush1.bf16.msra.mxu0 0
        %1453 = vmatprep.subr.bf16.mxu0 0
        %1454 = vmatpush1.bf16.msra.mxu0 0
        %1455 = vmatprep.subr.bf16.mxu0 0
        %1456 = vmatpush1.bf16.msra.mxu0 0
        %1457 = vmatprep.subr.bf16.mxu0 0
        %1458 = vmatpush1.bf16.msra.mxu0 0
        %1459 = vmatprep.subr.bf16.mxu0 0
        %1460 = vmatpush1.bf16.msra.mxu0 0
        %1461 = vmatprep.subr.bf16.mxu0 0
        %1462 = vmatpush1.bf16.msra.mxu0 0
        %1463 = vmatprep.subr.bf16.mxu0 0
        %1464 = vmatpush1.bf16.msra.mxu0 0
        %1465 = vmatprep.subr.bf16.mxu0 0
        %1466 = vmatpush1.bf16.msra.mxu0 0
        %1467 = vmatprep.subr.bf16.mxu0 0
        %1468 = vmatpush1.bf16.msra.mxu0 0
        %1469 = vmatprep.subr.bf16.mxu0 0
        %1470 = vmatpush1.bf16.msra.mxu0 0
        %1471 = vmatprep.subr.bf16.mxu0 0
        %1472 = vmatpush1.bf16.msra.mxu0 0
        %1473 = vmatprep.mubr.bf16.mxu0 0
        %1474 = vmatmul.mubr.bf16.gmra.mrb[0].mxu0 %v1436
        %v1475 = vpop.f32.mrb[0].mxu0
        %v1476 = vadd.f32 %v308, %v1475
        %v1477 = vpop.f32.mrb[0].mxu0
        %v1478 = vadd.f32 %v309, %v1477
        %v1479 = vpop.f32.mrb[0].mxu0
        %v1480 = vadd.f32 %v310, %v1479
        %v1481 = vpop.f32.mrb[0].mxu0
        %v1482 = vadd.f32 %v311, %v1481
        %1483 = vmatprep.mubr.bf16.mxu0 0
        %1484 = vmatmul.mubr.bf16.gmra.mrb[0].mxu0 %v1439
        %v1485 = vpop.f32.mrb[0].mxu0
        %v1486 = vadd.f32 %v312, %v1485
        %v1487 = vpop.f32.mrb[0].mxu0
        %v1488 = vadd.f32 %v313, %v1487
        %v1489 = vpop.f32.mrb[0].mxu0
        %v1490 = vadd.f32 %v314, %v1489
        %v1491 = vpop.f32.mrb[0].mxu0
        %v1492 = vadd.f32 %v315, %v1491
        %1493 = vdwg.mxu0
        %1494 = vst [vmem:[%s301] sm:$0xff] %v1476
        %1495 = vst [vmem:[%s301 + $0x8] sm:$0xff] %v1478
        %1496 = vst [vmem:[%s301 + $0x10] sm:$0xff] %v1480
        %1497 = vst [vmem:[%s301 + $0x18] sm:$0xff] %v1482
        %1498 = vst [vmem:[%s301 + $0x20] sm:$0xff] %v1486
        %1499 = vst [vmem:[%s301 + $0x28] sm:$0xff] %v1488
        %1500 = vst [vmem:[%s301 + $0x30] sm:$0xff] %v1490
        %1501 = vst [vmem:[%s301 + $0x38] sm:$0xff] %v1492
        %s1502 = sand.u32 %s183, 1
        %s1503 = scalar_lea.sflag [#allocation5], %s1502
        %s1504 = sand.u32 %s183, 1
        %s1505 = smul.addr %s1504, 64
        %s1506 = scalar_lea.vmem [#allocation8], %s1505
        // Predicated region
        $region57: #{tpu_custom_call.1} parent=47 // pred_check
          %p1507 = pneg %p193
        $region58: #{tpu_custom_call.1} parent=47 // pred_check_branch
          %1509 = sbr.rel (%p1507) target = $region60
        $region59: #{tpu_custom_call.1} parent=47 // pred_region
          %s1511 = ssub.s32 1024, 1024
          %1512 = vsyncadd %s1503, %s1511
          %s1513 = smul.addr %s23, 8
          %s1514 = smul.addr %s1513, 128
          %s1515 = scalar_lea.hbm %s7, %s1514
          %s1516 = sshll.u32 %s1506, 4
          %s1517 = int_to_ptr.vmem [resolvable:$true] %s1516
          %1522 = dma.vmem_to_hbm [thread:$0]  %s1517, 1024, %s1515, %s1503, 256, 256, 16
        $region60: #{tpu_custom_call.1} parent=47 // pred_fallthru
          _
      $region48: #{tpu_custom_call.1} parent=5 // pred_fallthru
        _
      %p1523 = scmp.le.s32.totalorder 2, %s18
      // Predicated region
      $region61: #{tpu_custom_call.1} parent=5 // pred_check
        %p1524 = pneg %p1523
      $region62: #{tpu_custom_call.1} parent=5 // pred_check_branch
        %1526 = sbr.rel (%p1524) target = $region64
      $region63: #{tpu_custom_call.1} parent=5 // pred_region
        %s1527 = ssub.s32 %s18, 2
        // Predicated region
        $region65: #{tpu_custom_call.1} parent=63 // pred_check
          %p1528 = pneg %p199
        $region66: #{tpu_custom_call.1} parent=63 // pred_check_branch
          %1530 = sbr.rel (%p1528) target = $region68
        $region67: #{tpu_custom_call.1} parent=63 // pred_region
          %s1531 = sand.u32 %s184, 1
          %s1532 = scalar_lea.sflag [#allocation5], %s1531
          %s1533 = sand.u32 %s184, 1
          %s1534 = smul.addr %s1533, 64
          %s1535 = scalar_lea.vmem [#allocation8], %s1534
          %1536 = dma.done %s1532, 1024
        $region68: #{tpu_custom_call.1} parent=63 // pred_fallthru
          _
      $region64: #{tpu_custom_call.1} parent=5 // pred_fallthru
        _
    $region6: #{tpu_custom_call.1} parent=1 // loop_footer
      %s22 = sadd.s32 1, %s18
    $region7: #{tpu_custom_call.1} parent=1 // loop_footer_branch
      %17 = sbr.rel target = $region3
    $region8: #{tpu_custom_call.1} parent=1 // loop_exit
      _
    %1537 = vsyncpa [#allocation4], 1
    %s1538 = scalar_lea.sflag [#allocation4], 1
    %1539 = vsyncpa %s1538, 1
    %1540 = vsyncpa [#allocation7], 1
    %1541 = vsyncpa [#allocation5], 1
    %s1542 = scalar_lea.sflag [#allocation5], 1
    %1543 = vsyncpa %s1542, 1

</llo_original>
